<compile_context>
chip_gen: v7x
topology: tpu7x:2x2x1
jax: 0.10.0
libtpu: 0.0.40
codegen_flags: <defaults>
</compile_context>

<pallas_src>
import jax
import jax.numpy as jnp
from jax import lax
from jax.experimental import pallas as pl
from jax.experimental.pallas import tpu as pltpu

# ----- static model configuration (small, consistent with VGCN's blocks) -----
B, N, C = 2, 8, 64            # batch, tokens, embed dim (VGCN: embed_dim=64)
NUM_HEADS = 4                 # VGCN: num_heads=4
HEAD_DIM = C // NUM_HEADS     # 16
HIDDEN = int(C * 4.0)         # 256 (mlp_ratio=4.0)
DEPTH = 4                     # VGCN: depth=4
EPS = 1e-6                    # VGCN: partial(nn.LayerNorm, eps=1e-6)
SCALE = HEAD_DIM ** -0.5      # qk_scale=None -> head_dim ** -0.5 (= 0.25, exact)
R = B * N                     # flattened token rows (16)
HR = NUM_HEADS * R            # head-stacked rows (64)
NEG_INF = -1e30               # additive mask value


def _layernorm(x, gamma, beta):
    mu = jnp.mean(x, axis=-1, keepdims=True)
    var = jnp.mean((x - mu) ** 2, axis=-1, keepdims=True)
    return (x - mu) * lax.rsqrt(var + EPS) * gamma + beta


def _gelu(x):
    # exact (erf-based) GELU, matching torch.nn.GELU default
    return 0.5 * x * (1.0 + lax.erf(x * 0.7071067811865476))


def blocks_kernel(x_ref, amask_ref,
                  g1_ref, b1_ref, wqkv_ref, bqkv_ref, wproj_ref, bproj_ref,
                  g2_ref, b2_ref, w1_ref, bb1_ref, w2_ref, bb2_ref,
                  out_ref):
    d = pl.program_id(0)

    # The output block index is (0, 0) for every depth step, so out_ref stays resident
    # in VMEM across the grid and acts as the residual-stream carry.
    @pl.when(d == 0)
    def _init():
        out_ref[...] = x_ref[...]

    x = out_ref[...].astype(jnp.float32)                         # (R, C)

    # ---------------- attention ----------------
    h = _layernorm(x, g1_ref[...], b1_ref[...])                  # (R, C)
    # qk scale is pre-folded into the q columns of wqkv/bqkv (wrapper side).
    qkv = jnp.dot(h, wqkv_ref[...],
                  preferred_element_type=jnp.float32) + bqkv_ref[...]   # (R, 3C)
    q = qkv[:, 0:C]
    k = qkv[:, C:2 * C]
    v = qkv[:, 2 * C:3 * C]

    # head-stack: lane-sliced (R, NUM_HEADS*HEAD_DIM) -> row-stacked (NUM_HEADS*R, HEAD_DIM)
    def head_stack(t):
        return jnp.concatenate(
            [t[:, i * HEAD_DIM:(i + 1) * HEAD_DIM] for i in range(NUM_HEADS)], axis=0)

    qs, ks, vs = head_stack(q), head_stack(k), head_stack(v)     # (HR, HEAD_DIM)

    # single score matmul over all heads & batches; cross-head / cross-batch pairs are
    # masked with the precomputed additive block-diagonal mask.
    s = lax.dot_general(qs, ks, (((1,), (1,)), ((), ())),
                        preferred_element_type=jnp.float32)      # (HR, HR)
    s = s + amask_ref[...]
    s = s - jnp.max(s, axis=-1, keepdims=True)
    p = jnp.exp(s)
    p = p / jnp.sum(p, axis=-1, keepdims=True)                   # exact softmax denom
    o = jnp.dot(p, vs, preferred_element_type=jnp.float32)       # (HR, HEAD_DIM)

    # un-stack heads back onto lanes: (NUM_HEADS*R, HEAD_DIM) -> (R, C)
    o_wide = jnp.concatenate(
        [o[i * R:(i + 1) * R, :] for i in range(NUM_HEADS)], axis=1)

    attn_out = jnp.dot(o_wide, wproj_ref[...],
                       preferred_element_type=jnp.float32) + bproj_ref[...]
    x = x + attn_out                                             # residual (drop_path = id)

    # ---------------- MLP ----------------
    h2 = _layernorm(x, g2_ref[...], b2_ref[...])
    h2 = jnp.dot(h2, w1_ref[...], preferred_element_type=jnp.float32) + bb1_ref[...]
    h2 = _gelu(h2)
    h2 = jnp.dot(h2, w2_ref[...], preferred_element_type=jnp.float32) + bb2_ref[...]
    out_ref[...] = (x + h2).astype(out_ref.dtype)                # carried to next depth


def prepare_params(block_params):
    """One-time parameter preparation (call OUTSIDE the per-forward path):
    weight transposes, qk-scale folding, depth stacking and the constant attention mask."""
    scale_vec = jnp.concatenate([jnp.full((C,), SCALE, jnp.float32),
                                 jnp.ones((2 * C,), jnp.float32)])

    def prep_one(p):
        g1, b1, wqkv, bqkv, wproj, bproj, g2, b2, w1, bb1, w2, bb2 = p
        wqkv_t = wqkv.T * scale_vec[None, :]            # (C, 3C), q columns pre-scaled
        bqkv_s = (bqkv * scale_vec).reshape(1, 3 * C)
        return (g1.reshape(1, C), b1.reshape(1, C),
                wqkv_t, bqkv_s,
                wproj.T, bproj.reshape(1, C),
                g2.reshape(1, C), b2.reshape(1, C),
                w1.T, bb1.reshape(1, HIDDEN),
                w2.T, bb2.reshape(1, C))

    prepped = [prep_one(p) for p in block_params]
    stacked = tuple(jnp.stack([pb[i] for pb in prepped], axis=0) for i in range(12))

    # combined batch + head block-diagonal additive mask over head-stacked rows/cols
    idx = jnp.arange(HR)
    head_id = idx // R
    batch_id = (idx % R) // N
    same = (head_id[:, None] == head_id[None, :]) & (batch_id[:, None] == batch_id[None, :])
    amask = jnp.where(same, 0.0, NEG_INF).astype(jnp.float32)
    return stacked, amask


def vgcn_blocks(x, prepared):
    stacked, amask = prepared
    x2d = x.reshape(R, C)

    def const2(shape2):                                  # resident for all depth steps
        return pl.BlockSpec(shape2, lambda d: (0, 0))

    def depth3(shape2):                                  # depth-stacked, indexed by d
        return pl.BlockSpec((None,) + shape2, lambda d: (d, 0, 0))

    per_block_shapes = [(1, C), (1, C),                  # g1, b1
                        (C, 3 * C), (1, 3 * C),          # wqkv_t, bqkv
                        (C, C), (1, C),                  # wproj_t, bproj
                        (1, C), (1, C),                  # g2, b2
                        (C, HIDDEN), (1, HIDDEN),        # w1_t, bb1
                        (HIDDEN, C), (1, C)]             # w2_t, bb2

    in_specs = [const2((R, C)), const2((HR, HR))] + [depth3(s) for s in per_block_shapes]

    out2d = pl.pallas_call(
        blocks_kernel,
        out_shape=jax.ShapeDtypeStruct((R, C), x.dtype),
        grid=(DEPTH,),
        in_specs=in_specs,
        out_specs=const2((R, C)),
        compiler_params=pltpu.CompilerParams(dimension_semantics=("arbitrary",)),
    )(x2d, amask, *stacked)
    return out2d.reshape(B, N, C)


# ------------------------- pure-JAX reference (one Block) -------------------------
def ref_block(x, p):
    g1, b1, wqkv, bqkv, wproj, bproj, g2, b2, w1, bb1, w2, bb2 = p

    def ln(v, g, b):
        mu = jnp.mean(v, axis=-1, keepdims=True)
        var = jnp.mean((v - mu) ** 2, axis=-1, keepdims=True)
        return (v - mu) / jnp.sqrt(var + EPS) * g + b

    h = ln(x, g1, b1)
    qkv = h @ wqkv.T + bqkv                                   # (B, N, 3C)
    qkv = qkv.reshape(B, N, 3, NUM_HEADS, HEAD_DIM).transpose(2, 0, 3, 1, 4)
    q, k, v = qkv[0], qkv[1], qkv[2]                          # (B, H, N, hd)
    attn = (q @ jnp.swapaxes(k, -2, -1)) * SCALE
    attn = jax.nn.softmax(attn, axis=-1)
    o = (attn @ v).transpose(0, 2, 1, 3).reshape(B, N, C)
    x = x + (o @ wproj.T + bproj)

    h2 = ln(x, g2, b2)
    h2 = jax.nn.gelu(h2 @ w1.T + bb1, approximate=False)
    return x + (h2 @ w2.T + bb2)


# ------------------------- parameter init (PyTorch conventions) -------------------------
def init_params(key):
    blocks = []
    for kb in jax.random.split(key, DEPTH):
        ks = jax.random.split(kb, 8)
        g1 = jnp.ones((C,), jnp.float32)
        b1 = jnp.zeros((C,), jnp.float32)
        wqkv = jax.random.normal(ks[0], (3 * C, C), jnp.float32) * 0.02
        bqkv = jax.random.normal(ks[1], (3 * C,), jnp.float32) * 0.02   # qkv_bias=True
        wproj = jax.random.normal(ks[2], (C, C), jnp.float32) * 0.02
        bproj = jax.random.normal(ks[3], (C,), jnp.float32) * 0.02
        g2 = jnp.ones((C,), jnp.float32)
        b2 = jnp.zeros((C,), jnp.float32)
        w1 = jax.random.normal(ks[4], (HIDDEN, C), jnp.float32) * 0.02
        bb1 = jax.random.normal(ks[5], (HIDDEN,), jnp.float32) * 0.02
        w2 = jax.random.normal(ks[6], (C, HIDDEN), jnp.float32) * 0.02
        bb2 = jax.random.normal(ks[7], (C,), jnp.float32) * 0.02
        blocks.append((g1, b1, wqkv, bqkv, wproj, bproj, g2, b2, w1, bb1, w2, bb2))
    return blocks


if __name__ == "__main__":
    key = jax.random.PRNGKey(0)
    kx, kp = jax.random.split(key)
    x = jax.random.normal(kx, (B, N, C), jnp.float32)
    block_params = init_params(kp)

    # one-time preparation (transposes / scale folding / mask) outside the per-call path
    prepared = prepare_params(block_params)

    fwd = jax.jit(vgcn_blocks)
    out = jax.block_until_ready(fwd(x, prepared))

    ref = x
    for p in block_params:
        ref = ref_block(ref, p)

    assert out.shape == (B, N, C)
    err = jnp.max(jnp.abs(out - ref))
    assert jnp.allclose(out, ref, atol=1e-4, rtol=1e-4), f"max abs err {err}"
    print("KERNEL_OK")
</pallas_src>

<mosaic_0001>
module attributes {stable_mosaic.version = 11 : i64} {
  func.func @blocks_kernel(%arg0: i32, %arg1: memref<16x64xf32, #tpu.memory_space<vmem>>, %arg2: memref<64x64xf32, #tpu.memory_space<vmem>>, %arg3: memref<1x1x64xf32, #tpu.memory_space<vmem>>, %arg4: memref<1x1x64xf32, #tpu.memory_space<vmem>>, %arg5: memref<1x64x192xf32, #tpu.memory_space<vmem>>, %arg6: memref<1x1x192xf32, #tpu.memory_space<vmem>>, %arg7: memref<1x64x64xf32, #tpu.memory_space<vmem>>, %arg8: memref<1x1x64xf32, #tpu.memory_space<vmem>>, %arg9: memref<1x1x64xf32, #tpu.memory_space<vmem>>, %arg10: memref<1x1x64xf32, #tpu.memory_space<vmem>>, %arg11: memref<1x64x256xf32, #tpu.memory_space<vmem>>, %arg12: memref<1x1x256xf32, #tpu.memory_space<vmem>>, %arg13: memref<1x256x64xf32, #tpu.memory_space<vmem>>, %arg14: memref<1x1x64xf32, #tpu.memory_space<vmem>>, %arg15: memref<16x64xf32, #tpu.memory_space<vmem>>) attributes {dimension_semantics = [#tpu.dimension_semantics<arbitrary>], iteration_bounds = array<i64: 4>, scalar_prefetch = 0 : i64, scratch_operands = 0 : i64, tpu.core_type = #tpu.core_type<tc>, window_params = [{pipeline_mode = #tpu.pipeline_mode<synchronous>, transform_indices = @transform_0, window_bounds = array<i64: 16, 64>}, {pipeline_mode = #tpu.pipeline_mode<synchronous>, transform_indices = @transform_1, window_bounds = array<i64: 64, 64>}, {transform_indices = @transform_2, window_bounds = array<i64: 1, 1, 64>}, {transform_indices = @transform_3, window_bounds = array<i64: 1, 1, 64>}, {transform_indices = @transform_4, window_bounds = array<i64: 1, 64, 192>}, {transform_indices = @transform_5, window_bounds = array<i64: 1, 1, 192>}, {transform_indices = @transform_6, window_bounds = array<i64: 1, 64, 64>}, {transform_indices = @transform_7, window_bounds = array<i64: 1, 1, 64>}, {transform_indices = @transform_8, window_bounds = array<i64: 1, 1, 64>}, {transform_indices = @transform_9, window_bounds = array<i64: 1, 1, 64>}, {transform_indices = @transform_10, window_bounds = array<i64: 1, 64, 256>}, {transform_indices = @transform_11, window_bounds = array<i64: 1, 1, 256>}, {transform_indices = @transform_12, window_bounds = array<i64: 1, 256, 64>}, {transform_indices = @transform_13, window_bounds = array<i64: 1, 1, 64>}, {pipeline_mode = #tpu.pipeline_mode<synchronous>, transform_indices = @transform_14, window_bounds = array<i64: 16, 64>}]} {
    %c0_i32 = arith.constant 0 : i32
    %0 = arith.cmpi eq, %arg0, %c0_i32 : i32
    %1 = arith.extui %0 : i1 to i32
    %c0_i32_0 = arith.constant 0 : i32
    %2 = arith.cmpi ne, %1, %c0_i32_0 : i32
    scf.if %2 {
      %c0_62 = arith.constant 0 : index
      %c0_63 = arith.constant 0 : index
      %131 = vector.load %arg1[%c0_62, %c0_63] : memref<16x64xf32, #tpu.memory_space<vmem>>, vector<16x64xf32>
      %c0_64 = arith.constant 0 : index
      %c0_65 = arith.constant 0 : index
      %132 = vector.load %arg15[%c0_64, %c0_65] : memref<16x64xf32, #tpu.memory_space<vmem>>, vector<16x64xf32>
      tpu.vector_store %arg15[%c0_64, %c0_65], %131 {strides = array<i32>} : memref<16x64xf32, #tpu.memory_space<vmem>>, vector<16x64xf32>,
    } else {
    }
    %c0 = arith.constant 0 : index
    %c0_1 = arith.constant 0 : index
    %3 = vector.load %arg15[%c0, %c0_1] : memref<16x64xf32, #tpu.memory_space<vmem>>, vector<16x64xf32>
    %c0_2 = arith.constant 0 : index
    %c0_3 = arith.constant 0 : index
    %c0_4 = arith.constant 0 : index
    %4 = vector.load %arg3[%c0_2, %c0_3, %c0_4] : memref<1x1x64xf32, #tpu.memory_space<vmem>>, vector<1x1x64xf32>
    %5 = vector.shape_cast %4 : vector<1x1x64xf32> to vector<1x64xf32>
    %c0_5 = arith.constant 0 : index
    %c0_6 = arith.constant 0 : index
    %c0_7 = arith.constant 0 : index
    %6 = vector.load %arg4[%c0_5, %c0_6, %c0_7] : memref<1x1x64xf32, #tpu.memory_space<vmem>>, vector<1x1x64xf32>
    %7 = vector.shape_cast %6 : vector<1x1x64xf32> to vector<1x64xf32>
    %cst = arith.constant dense<0.000000e+00> : vector<16xf32>
    %8 = vector.multi_reduction <add>, %3, %cst [1] : vector<16x64xf32> to vector<16xf32>
    %9 = vector.shape_cast %8 : vector<16xf32> to vector<16x1xf32>
    %cst_8 = arith.constant 6.400000e+01 : f32
    %10 = vector.broadcast %cst_8 : f32 to vector<16x1xf32>
    %11 = arith.divf %9, %10 : vector<16x1xf32>
    %12 = vector.broadcast %11 : vector<16x1xf32> to vector<16x64xf32>
    %13 = arith.subf %3, %12 : vector<16x64xf32>
    %14 = arith.mulf %13, %13 : vector<16x64xf32>
    %cst_9 = arith.constant dense<0.000000e+00> : vector<16xf32>
    %15 = vector.multi_reduction <add>, %14, %cst_9 [1] : vector<16x64xf32> to vector<16xf32>
    %16 = vector.shape_cast %15 : vector<16xf32> to vector<16x1xf32>
    %cst_10 = arith.constant 6.400000e+01 : f32
    %17 = vector.broadcast %cst_10 : f32 to vector<16x1xf32>
    %18 = arith.divf %16, %17 : vector<16x1xf32>
    %19 = vector.broadcast %11 : vector<16x1xf32> to vector<16x64xf32>
    %20 = arith.subf %3, %19 : vector<16x64xf32>
    %cst_11 = arith.constant 9.99999997E-7 : f32
    %21 = vector.broadcast %cst_11 : f32 to vector<16x1xf32>
    %22 = arith.addf %18, %21 : vector<16x1xf32>
    %23 = math.rsqrt %22 : vector<16x1xf32>
    %24 = vector.broadcast %23 : vector<16x1xf32> to vector<16x64xf32>
    %25 = arith.mulf %20, %24 : vector<16x64xf32>
    %26 = vector.broadcast %5 : vector<1x64xf32> to vector<16x64xf32>
    %27 = arith.mulf %25, %26 : vector<16x64xf32>
    %28 = vector.broadcast %7 : vector<1x64xf32> to vector<16x64xf32>
    %29 = arith.addf %27, %28 : vector<16x64xf32>
    %c0_12 = arith.constant 0 : index
    %c0_13 = arith.constant 0 : index
    %c0_14 = arith.constant 0 : index
    %30 = vector.load %arg5[%c0_12, %c0_13, %c0_14] : memref<1x64x192xf32, #tpu.memory_space<vmem>>, vector<1x64x192xf32>
    %31 = vector.shape_cast %30 : vector<1x64x192xf32> to vector<64x192xf32>
    %cst_15 = arith.constant dense<0.000000e+00> : vector<16x192xf32>
    %32 = tpu.matmul %29, %31, %cst_15 {dimension_numbers = #tpu.dot_dimension_numbers<[1], [0], [0], [1], [0, 0, 1, 1], [], []>} : vector<16x64xf32>, vector<64x192xf32>, vector<16x192xf32> -> vector<16x192xf32>
    %c0_16 = arith.constant 0 : index
    %c0_17 = arith.constant 0 : index
    %c0_18 = arith.constant 0 : index
    %33 = vector.load %arg6[%c0_16, %c0_17, %c0_18] : memref<1x1x192xf32, #tpu.memory_space<vmem>>, vector<1x1x192xf32>
    %34 = vector.shape_cast %33 : vector<1x1x192xf32> to vector<1x192xf32>
    %35 = vector.broadcast %34 : vector<1x192xf32> to vector<16x192xf32>
    %36 = arith.addf %32, %35 : vector<16x192xf32>
    %37 = vector.extract_strided_slice %36 {offsets = [0, 0], sizes = [16, 64], strides = [1, 1]} : vector<16x192xf32> to vector<16x64xf32>
    %38 = vector.extract_strided_slice %36 {offsets = [0, 64], sizes = [16, 64], strides = [1, 1]} : vector<16x192xf32> to vector<16x64xf32>
    %39 = vector.extract_strided_slice %36 {offsets = [0, 128], sizes = [16, 64], strides = [1, 1]} : vector<16x192xf32> to vector<16x64xf32>
    %40 = vector.extract_strided_slice %37 {offsets = [0, 0], sizes = [16, 16], strides = [1, 1]} : vector<16x64xf32> to vector<16x16xf32>
    %41 = vector.extract_strided_slice %37 {offsets = [0, 16], sizes = [16, 16], strides = [1, 1]} : vector<16x64xf32> to vector<16x16xf32>
    %42 = vector.extract_strided_slice %37 {offsets = [0, 32], sizes = [16, 16], strides = [1, 1]} : vector<16x64xf32> to vector<16x16xf32>
    %43 = vector.extract_strided_slice %37 {offsets = [0, 48], sizes = [16, 16], strides = [1, 1]} : vector<16x64xf32> to vector<16x16xf32>
    %44 = tpu.concatenate %40, %41, %42, %43 in 0 : vector<16x16xf32>, vector<16x16xf32>, vector<16x16xf32>, vector<16x16xf32> -> vector<64x16xf32>
    %45 = vector.extract_strided_slice %38 {offsets = [0, 0], sizes = [16, 16], strides = [1, 1]} : vector<16x64xf32> to vector<16x16xf32>
    %46 = vector.extract_strided_slice %38 {offsets = [0, 16], sizes = [16, 16], strides = [1, 1]} : vector<16x64xf32> to vector<16x16xf32>
    %47 = vector.extract_strided_slice %38 {offsets = [0, 32], sizes = [16, 16], strides = [1, 1]} : vector<16x64xf32> to vector<16x16xf32>
    %48 = vector.extract_strided_slice %38 {offsets = [0, 48], sizes = [16, 16], strides = [1, 1]} : vector<16x64xf32> to vector<16x16xf32>
    %49 = tpu.concatenate %45, %46, %47, %48 in 0 : vector<16x16xf32>, vector<16x16xf32>, vector<16x16xf32>, vector<16x16xf32> -> vector<64x16xf32>
    %50 = vector.extract_strided_slice %39 {offsets = [0, 0], sizes = [16, 16], strides = [1, 1]} : vector<16x64xf32> to vector<16x16xf32>
    %51 = vector.extract_strided_slice %39 {offsets = [0, 16], sizes = [16, 16], strides = [1, 1]} : vector<16x64xf32> to vector<16x16xf32>
    %52 = vector.extract_strided_slice %39 {offsets = [0, 32], sizes = [16, 16], strides = [1, 1]} : vector<16x64xf32> to vector<16x16xf32>
    %53 = vector.extract_strided_slice %39 {offsets = [0, 48], sizes = [16, 16], strides = [1, 1]} : vector<16x64xf32> to vector<16x16xf32>
    %54 = tpu.concatenate %50, %51, %52, %53 in 0 : vector<16x16xf32>, vector<16x16xf32>, vector<16x16xf32>, vector<16x16xf32> -> vector<64x16xf32>
    %cst_19 = arith.constant dense<0.000000e+00> : vector<64x64xf32>
    %55 = tpu.matmul %44, %49, %cst_19 {dimension_numbers = #tpu.dot_dimension_numbers<[1], [1], [0], [0], [0, 0, 1, 0], [], []>} : vector<64x16xf32>, vector<64x16xf32>, vector<64x64xf32> -> vector<64x64xf32>
    %c0_20 = arith.constant 0 : index
    %c0_21 = arith.constant 0 : index
    %56 = vector.load %arg2[%c0_20, %c0_21] : memref<64x64xf32, #tpu.memory_space<vmem>>, vector<64x64xf32>
    %57 = arith.addf %55, %56 : vector<64x64xf32>
    %cst_22 = arith.constant dense<0xFF800000> : vector<64xf32>
    %58 = vector.multi_reduction <maximumf>, %57, %cst_22 [1] : vector<64x64xf32> to vector<64xf32>
    %59 = vector.shape_cast %58 : vector<64xf32> to vector<64x1xf32>
    %60 = vector.broadcast %59 : vector<64x1xf32> to vector<64x64xf32>
    %61 = arith.subf %57, %60 : vector<64x64xf32>
    %62 = math.exp %61 : vector<64x64xf32>
    %cst_23 = arith.constant dense<0.000000e+00> : vector<64xf32>
    %63 = vector.multi_reduction <add>, %62, %cst_23 [1] : vector<64x64xf32> to vector<64xf32>
    %64 = vector.shape_cast %63 : vector<64xf32> to vector<64x1xf32>
    %65 = vector.broadcast %64 : vector<64x1xf32> to vector<64x64xf32>
    %66 = arith.divf %62, %65 : vector<64x64xf32>
    %cst_24 = arith.constant dense<0.000000e+00> : vector<64x16xf32>
    %67 = tpu.matmul %66, %54, %cst_24 {dimension_numbers = #tpu.dot_dimension_numbers<[1], [0], [0], [1], [0, 0, 1, 1], [], []>} : vector<64x64xf32>, vector<64x16xf32>, vector<64x16xf32> -> vector<64x16xf32>
    %68 = vector.extract_strided_slice %67 {offsets = [0, 0], sizes = [16, 16], strides = [1, 1]} : vector<64x16xf32> to vector<16x16xf32>
    %69 = vector.extract_strided_slice %67 {offsets = [16, 0], sizes = [16, 16], strides = [1, 1]} : vector<64x16xf32> to vector<16x16xf32>
    %70 = vector.extract_strided_slice %67 {offsets = [32, 0], sizes = [16, 16], strides = [1, 1]} : vector<64x16xf32> to vector<16x16xf32>
    %71 = vector.extract_strided_slice %67 {offsets = [48, 0], sizes = [16, 16], strides = [1, 1]} : vector<64x16xf32> to vector<16x16xf32>
    %72 = tpu.concatenate %68, %69, %70, %71 in 1 : vector<16x16xf32>, vector<16x16xf32>, vector<16x16xf32>, vector<16x16xf32> -> vector<16x64xf32>
    %c0_25 = arith.constant 0 : index
    %c0_26 = arith.constant 0 : index
    %c0_27 = arith.constant 0 : index
    %73 = vector.load %arg7[%c0_25, %c0_26, %c0_27] : memref<1x64x64xf32, #tpu.memory_space<vmem>>, vector<1x64x64xf32>
    %74 = vector.shape_cast %73 : vector<1x64x64xf32> to vector<64x64xf32>
    %cst_28 = arith.constant dense<0.000000e+00> : vector<16x64xf32>
    %75 = tpu.matmul %72, %74, %cst_28 {dimension_numbers = #tpu.dot_dimension_numbers<[1], [0], [0], [1], [0, 0, 1, 1], [], []>} : vector<16x64xf32>, vector<64x64xf32>, vector<16x64xf32> -> vector<16x64xf32>
    %c0_29 = arith.constant 0 : index
    %c0_30 = arith.constant 0 : index
    %c0_31 = arith.constant 0 : index
    %76 = vector.load %arg8[%c0_29, %c0_30, %c0_31] : memref<1x1x64xf32, #tpu.memory_space<vmem>>, vector<1x1x64xf32>
    %77 = vector.shape_cast %76 : vector<1x1x64xf32> to vector<1x64xf32>
    %78 = vector.broadcast %77 : vector<1x64xf32> to vector<16x64xf32>
    %79 = arith.addf %75, %78 : vector<16x64xf32>
    %80 = arith.addf %3, %79 : vector<16x64xf32>
    %c0_32 = arith.constant 0 : index
    %c0_33 = arith.constant 0 : index
    %c0_34 = arith.constant 0 : index
    %81 = vector.load %arg9[%c0_32, %c0_33, %c0_34] : memref<1x1x64xf32, #tpu.memory_space<vmem>>, vector<1x1x64xf32>
    %82 = vector.shape_cast %81 : vector<1x1x64xf32> to vector<1x64xf32>
    %c0_35 = arith.constant 0 : index
    %c0_36 = arith.constant 0 : index
    %c0_37 = arith.constant 0 : index
    %83 = vector.load %arg10[%c0_35, %c0_36, %c0_37] : memref<1x1x64xf32, #tpu.memory_space<vmem>>, vector<1x1x64xf32>
    %84 = vector.shape_cast %83 : vector<1x1x64xf32> to vector<1x64xf32>
    %cst_38 = arith.constant dense<0.000000e+00> : vector<16xf32>
    %85 = vector.multi_reduction <add>, %80, %cst_38 [1] : vector<16x64xf32> to vector<16xf32>
    %86 = vector.shape_cast %85 : vector<16xf32> to vector<16x1xf32>
    %cst_39 = arith.constant 6.400000e+01 : f32
    %87 = vector.broadcast %cst_39 : f32 to vector<16x1xf32>
    %88 = arith.divf %86, %87 : vector<16x1xf32>
    %89 = vector.broadcast %88 : vector<16x1xf32> to vector<16x64xf32>
    %90 = arith.subf %80, %89 : vector<16x64xf32>
    %91 = arith.mulf %90, %90 : vector<16x64xf32>
    %cst_40 = arith.constant dense<0.000000e+00> : vector<16xf32>
    %92 = vector.multi_reduction <add>, %91, %cst_40 [1] : vector<16x64xf32> to vector<16xf32>
    %93 = vector.shape_cast %92 : vector<16xf32> to vector<16x1xf32>
    %cst_41 = arith.constant 6.400000e+01 : f32
    %94 = vector.broadcast %cst_41 : f32 to vector<16x1xf32>
    %95 = arith.divf %93, %94 : vector<16x1xf32>
    %96 = vector.broadcast %88 : vector<16x1xf32> to vector<16x64xf32>
    %97 = arith.subf %80, %96 : vector<16x64xf32>
    %cst_42 = arith.constant 9.99999997E-7 : f32
    %98 = vector.broadcast %cst_42 : f32 to vector<16x1xf32>
    %99 = arith.addf %95, %98 : vector<16x1xf32>
    %100 = math.rsqrt %99 : vector<16x1xf32>
    %101 = vector.broadcast %100 : vector<16x1xf32> to vector<16x64xf32>
    %102 = arith.mulf %97, %101 : vector<16x64xf32>
    %103 = vector.broadcast %82 : vector<1x64xf32> to vector<16x64xf32>
    %104 = arith.mulf %102, %103 : vector<16x64xf32>
    %105 = vector.broadcast %84 : vector<1x64xf32> to vector<16x64xf32>
    %106 = arith.addf %104, %105 : vector<16x64xf32>
    %c0_43 = arith.constant 0 : index
    %c0_44 = arith.constant 0 : index
    %c0_45 = arith.constant 0 : index
    %107 = vector.load %arg11[%c0_43, %c0_44, %c0_45] : memref<1x64x256xf32, #tpu.memory_space<vmem>>, vector<1x64x256xf32>
    %108 = vector.shape_cast %107 : vector<1x64x256xf32> to vector<64x256xf32>
    %cst_46 = arith.constant dense<0.000000e+00> : vector<16x256xf32>
    %109 = tpu.matmul %106, %108, %cst_46 {dimension_numbers = #tpu.dot_dimension_numbers<[1], [0], [0], [1], [0, 0, 1, 1], [], []>} : vector<16x64xf32>, vector<64x256xf32>, vector<16x256xf32> -> vector<16x256xf32>
    %c0_47 = arith.constant 0 : index
    %c0_48 = arith.constant 0 : index
    %c0_49 = arith.constant 0 : index
    %110 = vector.load %arg12[%c0_47, %c0_48, %c0_49] : memref<1x1x256xf32, #tpu.memory_space<vmem>>, vector<1x1x256xf32>
    %111 = vector.shape_cast %110 : vector<1x1x256xf32> to vector<1x256xf32>
    %112 = vector.broadcast %111 : vector<1x256xf32> to vector<16x256xf32>
    %113 = arith.addf %109, %112 : vector<16x256xf32>
    %cst_50 = arith.constant 5.000000e-01 : f32
    %114 = vector.broadcast %cst_50 : f32 to vector<16x256xf32>
    %115 = arith.mulf %114, %113 : vector<16x256xf32>
    %cst_51 = arith.constant 0.707106769 : f32
    %116 = vector.broadcast %cst_51 : f32 to vector<16x256xf32>
    %117 = arith.mulf %113, %116 : vector<16x256xf32>
    %118 = math.erf %117 : vector<16x256xf32>
    %cst_52 = arith.constant 1.000000e+00 : f32
    %119 = vector.broadcast %cst_52 : f32 to vector<16x256xf32>
    %120 = arith.addf %119, %118 : vector<16x256xf32>
    %121 = arith.mulf %115, %120 : vector<16x256xf32>
    %c0_53 = arith.constant 0 : index
    %c0_54 = arith.constant 0 : index
    %c0_55 = arith.constant 0 : index
    %122 = vector.load %arg13[%c0_53, %c0_54, %c0_55] : memref<1x256x64xf32, #tpu.memory_space<vmem>>, vector<1x256x64xf32>
    %123 = vector.shape_cast %122 : vector<1x256x64xf32> to vector<256x64xf32>
    %cst_56 = arith.constant dense<0.000000e+00> : vector<16x64xf32>
    %124 = tpu.matmul %121, %123, %cst_56 {dimension_numbers = #tpu.dot_dimension_numbers<[1], [0], [0], [1], [0, 0, 1, 1], [], []>} : vector<16x256xf32>, vector<256x64xf32>, vector<16x64xf32> -> vector<16x64xf32>
    %c0_57 = arith.constant 0 : index
    %c0_58 = arith.constant 0 : index
    %c0_59 = arith.constant 0 : index
    %125 = vector.load %arg14[%c0_57, %c0_58, %c0_59] : memref<1x1x64xf32, #tpu.memory_space<vmem>>, vector<1x1x64xf32>
    %126 = vector.shape_cast %125 : vector<1x1x64xf32> to vector<1x64xf32>
    %127 = vector.broadcast %126 : vector<1x64xf32> to vector<16x64xf32>
    %128 = arith.addf %124, %127 : vector<16x64xf32>
    %129 = arith.addf %80, %128 : vector<16x64xf32>
    %c0_60 = arith.constant 0 : index
    %c0_61 = arith.constant 0 : index
    %130 = vector.load %arg15[%c0_60, %c0_61] : memref<16x64xf32, #tpu.memory_space<vmem>>, vector<16x64xf32>
    tpu.vector_store %arg15[%c0_60, %c0_61], %129 {strides = array<i32>} : memref<16x64xf32, #tpu.memory_space<vmem>>, vector<16x64xf32>,
    return
  }
  func.func @transform_0(%arg0: i32) -> (i32, i32) {
    %c0_i32 = arith.constant 0 : i32
    %c0_i32_0 = arith.constant 0 : i32
    %c0_i32_1 = arith.constant 0 : i32
    return %c0_i32, %c0_i32_0 : i32, i32
  }
  func.func @transform_1(%arg0: i32) -> (i32, i32) {
    %c0_i32 = arith.constant 0 : i32
    %c0_i32_0 = arith.constant 0 : i32
    %c0_i32_1 = arith.constant 0 : i32
    return %c0_i32, %c0_i32_0 : i32, i32
  }
  func.func @transform_2(%arg0: i32) -> (i32, i32, i32) {
    %c0_i32 = arith.constant 0 : i32
    %c0_i32_0 = arith.constant 0 : i32
    %c0_i32_1 = arith.constant 0 : i32
    return %arg0, %c0_i32, %c0_i32_0 : i32, i32, i32
  }
  func.func @transform_3(%arg0: i32) -> (i32, i32, i32) {
    %c0_i32 = arith.constant 0 : i32
    %c0_i32_0 = arith.constant 0 : i32
    %c0_i32_1 = arith.constant 0 : i32
    return %arg0, %c0_i32, %c0_i32_0 : i32, i32, i32
  }
  func.func @transform_4(%arg0: i32) -> (i32, i32, i32) {
    %c0_i32 = arith.constant 0 : i32
    %c0_i32_0 = arith.constant 0 : i32
    %c0_i32_1 = arith.constant 0 : i32
    return %arg0, %c0_i32, %c0_i32_0 : i32, i32, i32
  }
  func.func @transform_5(%arg0: i32) -> (i32, i32, i32) {
    %c0_i32 = arith.constant 0 : i32
    %c0_i32_0 = arith.constant 0 : i32
    %c0_i32_1 = arith.constant 0 : i32
    return %arg0, %c0_i32, %c0_i32_0 : i32, i32, i32
  }
  func.func @transform_6(%arg0: i32) -> (i32, i32, i32) {
    %c0_i32 = arith.constant 0 : i32
    %c0_i32_0 = arith.constant 0 : i32
    %c0_i32_1 = arith.constant 0 : i32
    return %arg0, %c0_i32, %c0_i32_0 : i32, i32, i32
  }
  func.func @transform_7(%arg0: i32) -> (i32, i32, i32) {
    %c0_i32 = arith.constant 0 : i32
    %c0_i32_0 = arith.constant 0 : i32
    %c0_i32_1 = arith.constant 0 : i32
    return %arg0, %c0_i32, %c0_i32_0 : i32, i32, i32
  }
  func.func @transform_8(%arg0: i32) -> (i32, i32, i32) {
    %c0_i32 = arith.constant 0 : i32
    %c0_i32_0 = arith.constant 0 : i32
    %c0_i32_1 = arith.constant 0 : i32
    return %arg0, %c0_i32, %c0_i32_0 : i32, i32, i32
  }
  func.func @transform_9(%arg0: i32) -> (i32, i32, i32) {
    %c0_i32 = arith.constant 0 : i32
    %c0_i32_0 = arith.constant 0 : i32
    %c0_i32_1 = arith.constant 0 : i32
    return %arg0, %c0_i32, %c0_i32_0 : i32, i32, i32
  }
  func.func @transform_10(%arg0: i32) -> (i32, i32, i32) {
    %c0_i32 = arith.constant 0 : i32
    %c0_i32_0 = arith.constant 0 : i32
    %c0_i32_1 = arith.constant 0 : i32
    return %arg0, %c0_i32, %c0_i32_0 : i32, i32, i32
  }
  func.func @transform_11(%arg0: i32) -> (i32, i32, i32) {
    %c0_i32 = arith.constant 0 : i32
    %c0_i32_0 = arith.constant 0 : i32
    %c0_i32_1 = arith.constant 0 : i32
    return %arg0, %c0_i32, %c0_i32_0 : i32, i32, i32
  }
  func.func @transform_12(%arg0: i32) -> (i32, i32, i32) {
    %c0_i32 = arith.constant 0 : i32
    %c0_i32_0 = arith.constant 0 : i32
    %c0_i32_1 = arith.constant 0 : i32
    return %arg0, %c0_i32, %c0_i32_0 : i32, i32, i32
  }
  func.func @transform_13(%arg0: i32) -> (i32, i32, i32) {
    %c0_i32 = arith.constant 0 : i32
    %c0_i32_0 = arith.constant 0 : i32
    %c0_i32_1 = arith.constant 0 : i32
    return %arg0, %c0_i32, %c0_i32_0 : i32, i32, i32
  }
  func.func @transform_14(%arg0: i32) -> (i32, i32) {
    %c0_i32 = arith.constant 0 : i32
    %c0_i32_0 = arith.constant 0 : i32
    %c0_i32_1 = arith.constant 0 : i32
    return %c0_i32, %c0_i32_0 : i32, i32
  }
}

</mosaic_0001>

<llo_original>
// kernel: vgcn_blocks.1
$region0: #{vgcn_blocks.1}
  #allocation0 [shape = 'u32[]', space=smem, size = 0x4, offset = 0x4, fixed_abs, tag = 'smem constant byte address 0x4 - core index']
  #allocation1 [shape = 'u32[144,128]{1,0:T(1,128)}', space=vmem, size = 0x12000, scoped, tag = 'internal scratch']
  %s0 = inlined_call_operand.vmem [shape: f32[16,64], index: 0, kind: input, shape index: {}]
  %s1 = inlined_call_operand.vmem [shape: f32[64,64], index: 1, kind: input, shape index: {}]
  %s2 = inlined_call_operand.vmem [shape: f32[4,1,64], index: 2, kind: input, shape index: {}]
  %s3 = inlined_call_operand.vmem [shape: f32[4,1,64], index: 3, kind: input, shape index: {}]
  %s4 = inlined_call_operand.vmem [shape: f32[4,64,192], index: 4, kind: input, shape index: {}]
  %s5 = inlined_call_operand.vmem [shape: f32[4,1,192], index: 5, kind: input, shape index: {}]
  %s6 = inlined_call_operand.vmem [shape: f32[4,64,64], index: 6, kind: input, shape index: {}]
  %s7 = inlined_call_operand.vmem [shape: f32[4,1,64], index: 7, kind: input, shape index: {}]
  %s8 = inlined_call_operand.vmem [shape: f32[4,1,64], index: 8, kind: input, shape index: {}]
  %s9 = inlined_call_operand.vmem [shape: f32[4,1,64], index: 9, kind: input, shape index: {}]
  %s10 = inlined_call_operand.vmem [shape: f32[4,64,256], index: 10, kind: input, shape index: {}]
  %s11 = inlined_call_operand.vmem [shape: f32[4,1,256], index: 11, kind: input, shape index: {}]
  %s12 = inlined_call_operand.vmem [shape: f32[4,256,64], index: 12, kind: input, shape index: {}]
  %s13 = inlined_call_operand.vmem [shape: f32[4,1,64], index: 13, kind: input, shape index: {}]
  %s14 = inlined_call_operand.hbm [shape: f32[16,64], index: 14, kind: output, shape index: {}]
  %s15 = sld [smem:[#allocation0]]
  $region93: #{vgcn_blocks.1} parent=0
    _
  %s17 = ssub.s32 1, %s15
  %s18 = scalar_select 0, %s17, %s15
  $region1: #{vgcn_blocks.1} parent=0
    #allocation2 [shape = 'u8[8192]{0}', space=vmem, size = 0x2000, scoped, tag = 'output window, operand 0, single buffered']
    #allocation3 [shape = 's32[2]{0}', space=sflag, size = 0x8, scoped, tag = 'scoped memory for vgcn_blocks.1']
    %19 = vsyncpa [#allocation3], 0
    loop: start=0, step=1, limit=6
    $region2: #{vgcn_blocks.1} parent=1 // loop_pre_header
      _
    $region3: #{vgcn_blocks.1} parent=1 // loop_header
      %s21 = sphi 0, %s25
      %p22 = scmp.ge.s32.totalorder %s21, 6
      %s29 = sphi 0, %s29
      %s31 = sphi 0, %s29
      %s32 = sphi 0, %s31
      %s46 = sphi 0, %s32
      %s50 = sphi 0, %s50
      %s52 = sphi 0, %s50
      %s53 = sphi 0, %s52
      %s67 = sphi 0, %s53
      %s73 = sphi 0, %s75
      %s76 = sphi 0, %s73
      %s77 = sphi 0, %s76
      %s93 = sphi 0, %s77
      %s99 = sphi 0, %s101
      %s102 = sphi 0, %s99
      %s103 = sphi 0, %s102
      %s119 = sphi 0, %s103
      %s125 = sphi 0, %s127
      %s128 = sphi 0, %s125
      %s129 = sphi 0, %s128
      %s145 = sphi 0, %s129
      %s151 = sphi 0, %s153
      %s154 = sphi 0, %s151
      %s155 = sphi 0, %s154
      %s171 = sphi 0, %s155
      %s177 = sphi 0, %s179
      %s180 = sphi 0, %s177
      %s181 = sphi 0, %s180
      %s197 = sphi 0, %s181
      %s203 = sphi 0, %s205
      %s206 = sphi 0, %s203
      %s207 = sphi 0, %s206
      %s223 = sphi 0, %s207
      %s229 = sphi 0, %s231
      %s232 = sphi 0, %s229
      %s233 = sphi 0, %s232
      %s249 = sphi 0, %s233
      %s255 = sphi 0, %s257
      %s258 = sphi 0, %s255
      %s259 = sphi 0, %s258
      %s275 = sphi 0, %s259
      %s281 = sphi 0, %s283
      %s284 = sphi 0, %s281
      %s285 = sphi 0, %s284
      %s301 = sphi 0, %s285
      %s307 = sphi 0, %s309
      %s310 = sphi 0, %s307
      %s311 = sphi 0, %s310
      %s327 = sphi 0, %s311
      %s333 = sphi 0, %s335
      %s336 = sphi 0, %s333
      %s337 = sphi 0, %s336
      %s353 = sphi 0, %s337
      %s359 = sphi 0, %s361
      %s362 = sphi 0, %s359
      %s363 = sphi 0, %s362
      %s379 = sphi 0, %s363
      %s383 = sphi 0, %s383
      %s385 = sphi 0, %s383
      %s386 = sphi 0, %s385
      %s400 = sphi 0, %s386
    $region4: #{vgcn_blocks.1} parent=1 // loop_header_branch
      %24 = sbr.rel (%p22) target = $region8
    $region5: #{vgcn_blocks.1} parent=1 // loop_body
      %s26 = ssub.s32 %s21, 1
      %s27 = ssub.s32 %s21, 2
      %s28 = sadd.s32 %s21, 1
      %s30 = sadd.s32 %s29, 1
      %p33 = scmp.eq.s32.totalorder %s21, 3
      %p34 = scmp.ne.s32.totalorder %s29, %s31
      %p35 = scmp.eq.s32.totalorder %s21, 0
      %p36 = por %p34, %p35
      %p37 = scmp.ne.s32.totalorder %s29, %s31
      %p38 = scmp.eq.s32.totalorder %s26, 3
      %p39 = por %p37, %p38
      %p40 = scmp.ne.s32.totalorder %s31, %s32
      %p41 = scmp.eq.s32.totalorder %s26, 0
      %p42 = por %p40, %p41
      %p43 = scmp.ne.s32.totalorder %s31, %s32
      %p44 = scmp.eq.s32.totalorder %s27, 3
      %p45 = por %p43, %p44
      %p47 = scmp.ne.s32.totalorder %s32, %s46
      %p48 = scmp.eq.s32.totalorder %s27, 0
      %p49 = por %p47, %p48
      %s51 = sadd.s32 %s50, 1
      %p54 = scmp.eq.s32.totalorder %s21, 3
      %p55 = scmp.ne.s32.totalorder %s50, %s52
      %p56 = scmp.eq.s32.totalorder %s21, 0
      %p57 = por %p55, %p56
      %p58 = scmp.ne.s32.totalorder %s50, %s52
      %p59 = scmp.eq.s32.totalorder %s26, 3
      %p60 = por %p58, %p59
      %p61 = scmp.ne.s32.totalorder %s52, %s53
      %p62 = scmp.eq.s32.totalorder %s26, 0
      %p63 = por %p61, %p62
      %p64 = scmp.ne.s32.totalorder %s52, %s53
      %p65 = scmp.eq.s32.totalorder %s27, 3
      %p66 = por %p64, %p65
      %p68 = scmp.ne.s32.totalorder %s53, %s67
      %p69 = scmp.eq.s32.totalorder %s27, 0
      %p70 = por %p68, %p69
      %s71 = ssub.s32 %s21, %s28
      %p72 = scmp.eq.s32.totalorder %s71, 0
      %s74 = sadd.s32 %s73, 1
      %s75 = scalar_select %p72, %s73, %s74
      %p78 = pneg %p72
      %p79 = scmp.eq.s32.totalorder %s21, 3
      %p80 = por %p78, %p79
      %p81 = scmp.ne.s32.totalorder %s73, %s76
      %p82 = scmp.eq.s32.totalorder %s21, 0
      %p83 = por %p81, %p82
      %p84 = scmp.ne.s32.totalorder %s73, %s76
      %p85 = scmp.eq.s32.totalorder %s26, 3
      %p86 = por %p84, %p85
      %p87 = scmp.ne.s32.totalorder %s76, %s77
      %p88 = scmp.eq.s32.totalorder %s26, 0
      %p89 = por %p87, %p88
      %p90 = scmp.ne.s32.totalorder %s76, %s77
      %p91 = scmp.eq.s32.totalorder %s27, 3
      %p92 = por %p90, %p91
      %p94 = scmp.ne.s32.totalorder %s77, %s93
      %p95 = scmp.eq.s32.totalorder %s27, 0
      %p96 = por %p94, %p95
      %s97 = ssub.s32 %s21, %s28
      %p98 = scmp.eq.s32.totalorder %s97, 0
      %s100 = sadd.s32 %s99, 1
      %s101 = scalar_select %p98, %s99, %s100
      %p104 = pneg %p98
      %p105 = scmp.eq.s32.totalorder %s21, 3
      %p106 = por %p104, %p105
      %p107 = scmp.ne.s32.totalorder %s99, %s102
      %p108 = scmp.eq.s32.totalorder %s21, 0
      %p109 = por %p107, %p108
      %p110 = scmp.ne.s32.totalorder %s99, %s102
      %p111 = scmp.eq.s32.totalorder %s26, 3
      %p112 = por %p110, %p111
      %p113 = scmp.ne.s32.totalorder %s102, %s103
      %p114 = scmp.eq.s32.totalorder %s26, 0
      %p115 = por %p113, %p114
      %p116 = scmp.ne.s32.totalorder %s102, %s103
      %p117 = scmp.eq.s32.totalorder %s27, 3
      %p118 = por %p116, %p117
      %p120 = scmp.ne.s32.totalorder %s103, %s119
      %p121 = scmp.eq.s32.totalorder %s27, 0
      %p122 = por %p120, %p121
      %s123 = ssub.s32 %s21, %s28
      %p124 = scmp.eq.s32.totalorder %s123, 0
      %s126 = sadd.s32 %s125, 1
      %s127 = scalar_select %p124, %s125, %s126
      %p130 = pneg %p124
      %p131 = scmp.eq.s32.totalorder %s21, 3
      %p132 = por %p130, %p131
      %p133 = scmp.ne.s32.totalorder %s125, %s128
      %p134 = scmp.eq.s32.totalorder %s21, 0
      %p135 = por %p133, %p134
      %p136 = scmp.ne.s32.totalorder %s125, %s128
      %p137 = scmp.eq.s32.totalorder %s26, 3
      %p138 = por %p136, %p137
      %p139 = scmp.ne.s32.totalorder %s128, %s129
      %p140 = scmp.eq.s32.totalorder %s26, 0
      %p141 = por %p139, %p140
      %p142 = scmp.ne.s32.totalorder %s128, %s129
      %p143 = scmp.eq.s32.totalorder %s27, 3
      %p144 = por %p142, %p143
      %p146 = scmp.ne.s32.totalorder %s129, %s145
      %p147 = scmp.eq.s32.totalorder %s27, 0
      %p148 = por %p146, %p147
      %s149 = ssub.s32 %s21, %s28
      %p150 = scmp.eq.s32.totalorder %s149, 0
      %s152 = sadd.s32 %s151, 1
      %s153 = scalar_select %p150, %s151, %s152
      %p156 = pneg %p150
      %p157 = scmp.eq.s32.totalorder %s21, 3
      %p158 = por %p156, %p157
      %p159 = scmp.ne.s32.totalorder %s151, %s154
      %p160 = scmp.eq.s32.totalorder %s21, 0
      %p161 = por %p159, %p160
      %p162 = scmp.ne.s32.totalorder %s151, %s154
      %p163 = scmp.eq.s32.totalorder %s26, 3
      %p164 = por %p162, %p163
      %p165 = scmp.ne.s32.totalorder %s154, %s155
      %p166 = scmp.eq.s32.totalorder %s26, 0
      %p167 = por %p165, %p166
      %p168 = scmp.ne.s32.totalorder %s154, %s155
      %p169 = scmp.eq.s32.totalorder %s27, 3
      %p170 = por %p168, %p169
      %p172 = scmp.ne.s32.totalorder %s155, %s171
      %p173 = scmp.eq.s32.totalorder %s27, 0
      %p174 = por %p172, %p173
      %s175 = ssub.s32 %s21, %s28
      %p176 = scmp.eq.s32.totalorder %s175, 0
      %s178 = sadd.s32 %s177, 1
      %s179 = scalar_select %p176, %s177, %s178
      %p182 = pneg %p176
      %p183 = scmp.eq.s32.totalorder %s21, 3
      %p184 = por %p182, %p183
      %p185 = scmp.ne.s32.totalorder %s177, %s180
      %p186 = scmp.eq.s32.totalorder %s21, 0
      %p187 = por %p185, %p186
      %p188 = scmp.ne.s32.totalorder %s177, %s180
      %p189 = scmp.eq.s32.totalorder %s26, 3
      %p190 = por %p188, %p189
      %p191 = scmp.ne.s32.totalorder %s180, %s181
      %p192 = scmp.eq.s32.totalorder %s26, 0
      %p193 = por %p191, %p192
      %p194 = scmp.ne.s32.totalorder %s180, %s181
      %p195 = scmp.eq.s32.totalorder %s27, 3
      %p196 = por %p194, %p195
      %p198 = scmp.ne.s32.totalorder %s181, %s197
      %p199 = scmp.eq.s32.totalorder %s27, 0
      %p200 = por %p198, %p199
      %s201 = ssub.s32 %s21, %s28
      %p202 = scmp.eq.s32.totalorder %s201, 0
      %s204 = sadd.s32 %s203, 1
      %s205 = scalar_select %p202, %s203, %s204
      %p208 = pneg %p202
      %p209 = scmp.eq.s32.totalorder %s21, 3
      %p210 = por %p208, %p209
      %p211 = scmp.ne.s32.totalorder %s203, %s206
      %p212 = scmp.eq.s32.totalorder %s21, 0
      %p213 = por %p211, %p212
      %p214 = scmp.ne.s32.totalorder %s203, %s206
      %p215 = scmp.eq.s32.totalorder %s26, 3
      %p216 = por %p214, %p215
      %p217 = scmp.ne.s32.totalorder %s206, %s207
      %p218 = scmp.eq.s32.totalorder %s26, 0
      %p219 = por %p217, %p218
      %p220 = scmp.ne.s32.totalorder %s206, %s207
      %p221 = scmp.eq.s32.totalorder %s27, 3
      %p222 = por %p220, %p221
      %p224 = scmp.ne.s32.totalorder %s207, %s223
      %p225 = scmp.eq.s32.totalorder %s27, 0
      %p226 = por %p224, %p225
      %s227 = ssub.s32 %s21, %s28
      %p228 = scmp.eq.s32.totalorder %s227, 0
      %s230 = sadd.s32 %s229, 1
      %s231 = scalar_select %p228, %s229, %s230
      %p234 = pneg %p228
      %p235 = scmp.eq.s32.totalorder %s21, 3
      %p236 = por %p234, %p235
      %p237 = scmp.ne.s32.totalorder %s229, %s232
      %p238 = scmp.eq.s32.totalorder %s21, 0
      %p239 = por %p237, %p238
      %p240 = scmp.ne.s32.totalorder %s229, %s232
      %p241 = scmp.eq.s32.totalorder %s26, 3
      %p242 = por %p240, %p241
      %p243 = scmp.ne.s32.totalorder %s232, %s233
      %p244 = scmp.eq.s32.totalorder %s26, 0
      %p245 = por %p243, %p244
      %p246 = scmp.ne.s32.totalorder %s232, %s233
      %p247 = scmp.eq.s32.totalorder %s27, 3
      %p248 = por %p246, %p247
      %p250 = scmp.ne.s32.totalorder %s233, %s249
      %p251 = scmp.eq.s32.totalorder %s27, 0
      %p252 = por %p250, %p251
      %s253 = ssub.s32 %s21, %s28
      %p254 = scmp.eq.s32.totalorder %s253, 0
      %s256 = sadd.s32 %s255, 1
      %s257 = scalar_select %p254, %s255, %s256
      %p260 = pneg %p254
      %p261 = scmp.eq.s32.totalorder %s21, 3
      %p262 = por %p260, %p261
      %p263 = scmp.ne.s32.totalorder %s255, %s258
      %p264 = scmp.eq.s32.totalorder %s21, 0
      %p265 = por %p263, %p264
      %p266 = scmp.ne.s32.totalorder %s255, %s258
      %p267 = scmp.eq.s32.totalorder %s26, 3
      %p268 = por %p266, %p267
      %p269 = scmp.ne.s32.totalorder %s258, %s259
      %p270 = scmp.eq.s32.totalorder %s26, 0
      %p271 = por %p269, %p270
      %p272 = scmp.ne.s32.totalorder %s258, %s259
      %p273 = scmp.eq.s32.totalorder %s27, 3
      %p274 = por %p272, %p273
      %p276 = scmp.ne.s32.totalorder %s259, %s275
      %p277 = scmp.eq.s32.totalorder %s27, 0
      %p278 = por %p276, %p277
      %s279 = ssub.s32 %s21, %s28
      %p280 = scmp.eq.s32.totalorder %s279, 0
      %s282 = sadd.s32 %s281, 1
      %s283 = scalar_select %p280, %s281, %s282
      %p286 = pneg %p280
      %p287 = scmp.eq.s32.totalorder %s21, 3
      %p288 = por %p286, %p287
      %p289 = scmp.ne.s32.totalorder %s281, %s284
      %p290 = scmp.eq.s32.totalorder %s21, 0
      %p291 = por %p289, %p290
      %p292 = scmp.ne.s32.totalorder %s281, %s284
      %p293 = scmp.eq.s32.totalorder %s26, 3
      %p294 = por %p292, %p293
      %p295 = scmp.ne.s32.totalorder %s284, %s285
      %p296 = scmp.eq.s32.totalorder %s26, 0
      %p297 = por %p295, %p296
      %p298 = scmp.ne.s32.totalorder %s284, %s285
      %p299 = scmp.eq.s32.totalorder %s27, 3
      %p300 = por %p298, %p299
      %p302 = scmp.ne.s32.totalorder %s285, %s301
      %p303 = scmp.eq.s32.totalorder %s27, 0
      %p304 = por %p302, %p303
      %s305 = ssub.s32 %s21, %s28
      %p306 = scmp.eq.s32.totalorder %s305, 0
      %s308 = sadd.s32 %s307, 1
      %s309 = scalar_select %p306, %s307, %s308
      %p312 = pneg %p306
      %p313 = scmp.eq.s32.totalorder %s21, 3
      %p314 = por %p312, %p313
      %p315 = scmp.ne.s32.totalorder %s307, %s310
      %p316 = scmp.eq.s32.totalorder %s21, 0
      %p317 = por %p315, %p316
      %p318 = scmp.ne.s32.totalorder %s307, %s310
      %p319 = scmp.eq.s32.totalorder %s26, 3
      %p320 = por %p318, %p319
      %p321 = scmp.ne.s32.totalorder %s310, %s311
      %p322 = scmp.eq.s32.totalorder %s26, 0
      %p323 = por %p321, %p322
      %p324 = scmp.ne.s32.totalorder %s310, %s311
      %p325 = scmp.eq.s32.totalorder %s27, 3
      %p326 = por %p324, %p325
      %p328 = scmp.ne.s32.totalorder %s311, %s327
      %p329 = scmp.eq.s32.totalorder %s27, 0
      %p330 = por %p328, %p329
      %s331 = ssub.s32 %s21, %s28
      %p332 = scmp.eq.s32.totalorder %s331, 0
      %s334 = sadd.s32 %s333, 1
      %s335 = scalar_select %p332, %s333, %s334
      %p338 = pneg %p332
      %p339 = scmp.eq.s32.totalorder %s21, 3
      %p340 = por %p338, %p339
      %p341 = scmp.ne.s32.totalorder %s333, %s336
      %p342 = scmp.eq.s32.totalorder %s21, 0
      %p343 = por %p341, %p342
      %p344 = scmp.ne.s32.totalorder %s333, %s336
      %p345 = scmp.eq.s32.totalorder %s26, 3
      %p346 = por %p344, %p345
      %p347 = scmp.ne.s32.totalorder %s336, %s337
      %p348 = scmp.eq.s32.totalorder %s26, 0
      %p349 = por %p347, %p348
      %p350 = scmp.ne.s32.totalorder %s336, %s337
      %p351 = scmp.eq.s32.totalorder %s27, 3
      %p352 = por %p350, %p351
      %p354 = scmp.ne.s32.totalorder %s337, %s353
      %p355 = scmp.eq.s32.totalorder %s27, 0
      %p356 = por %p354, %p355
      %s357 = ssub.s32 %s21, %s28
      %p358 = scmp.eq.s32.totalorder %s357, 0
      %s360 = sadd.s32 %s359, 1
      %s361 = scalar_select %p358, %s359, %s360
      %p364 = pneg %p358
      %p365 = scmp.eq.s32.totalorder %s21, 3
      %p366 = por %p364, %p365
      %p367 = scmp.ne.s32.totalorder %s359, %s362
      %p368 = scmp.eq.s32.totalorder %s21, 0
      %p369 = por %p367, %p368
      %p370 = scmp.ne.s32.totalorder %s359, %s362
      %p371 = scmp.eq.s32.totalorder %s26, 3
      %p372 = por %p370, %p371
      %p373 = scmp.ne.s32.totalorder %s362, %s363
      %p374 = scmp.eq.s32.totalorder %s26, 0
      %p375 = por %p373, %p374
      %p376 = scmp.ne.s32.totalorder %s362, %s363
      %p377 = scmp.eq.s32.totalorder %s27, 3
      %p378 = por %p376, %p377
      %p380 = scmp.ne.s32.totalorder %s363, %s379
      %p381 = scmp.eq.s32.totalorder %s27, 0
      %p382 = por %p380, %p381
      %s384 = sadd.s32 %s383, 1
      %p387 = scmp.eq.s32.totalorder %s21, 3
      %p388 = scmp.ne.s32.totalorder %s383, %s385
      %p389 = scmp.eq.s32.totalorder %s21, 0
      %p390 = por %p388, %p389
      %p391 = scmp.ne.s32.totalorder %s383, %s385
      %p392 = scmp.eq.s32.totalorder %s26, 3
      %p393 = por %p391, %p392
      %p394 = scmp.ne.s32.totalorder %s385, %s386
      %p395 = scmp.eq.s32.totalorder %s26, 0
      %p396 = por %p394, %p395
      %p397 = scmp.ne.s32.totalorder %s385, %s386
      %p398 = scmp.eq.s32.totalorder %s27, 3
      %p399 = por %p397, %p398
      %p401 = scmp.ne.s32.totalorder %s386, %s400
      %p402 = scmp.eq.s32.totalorder %s27, 0
      %p403 = por %p401, %p402
      %p404 = scmp.le.s32.totalorder 1, %s21
      %p405 = scmp.lt.s32.totalorder %s21, 5
      %p406 = pnand %p404, %p405
      %p407 = pneg %p406
      // Predicated region
      $region9: #{vgcn_blocks.1} parent=5 // pred_check
        _
      $region10: #{vgcn_blocks.1} parent=5 // pred_check_branch
        %409 = sbr.rel (%p406) target = $region12
      $region11: #{vgcn_blocks.1} parent=5 // pred_region
        %s410 = ssub.s32 %s21, 1
        // Predicated region
        $region13: #{vgcn_blocks.1} parent=11 // pred_check
          %p411 = pneg %p42
        $region14: #{vgcn_blocks.1} parent=11 // pred_check_branch
          %413 = sbr.rel (%p411) target = $region16
        $region15: #{vgcn_blocks.1} parent=11 // pred_region
          _
        $region16: #{vgcn_blocks.1} parent=11 // pred_fallthru
          _
        // Predicated region
        $region17: #{vgcn_blocks.1} parent=11 // pred_check
          %p414 = pneg %p63
        $region18: #{vgcn_blocks.1} parent=11 // pred_check_branch
          %416 = sbr.rel (%p414) target = $region20
        $region19: #{vgcn_blocks.1} parent=11 // pred_region
          _
        $region20: #{vgcn_blocks.1} parent=11 // pred_fallthru
          _
      $region12: #{vgcn_blocks.1} parent=5 // pred_fallthru
        _
      %p417 = scmp.lt.s32.totalorder %s21, 4
      // Predicated region
      $region21: #{vgcn_blocks.1} parent=5 // pred_check
        %p418 = pneg %p417
      $region22: #{vgcn_blocks.1} parent=5 // pred_check_branch
        %420 = sbr.rel (%p418) target = $region24
      $region23: #{vgcn_blocks.1} parent=5 // pred_region
        // Predicated region
        $region25: #{vgcn_blocks.1} parent=23 // pred_check
          %p421 = pneg %p83
        $region26: #{vgcn_blocks.1} parent=23 // pred_check_branch
          %423 = sbr.rel (%p421) target = $region28
        $region27: #{vgcn_blocks.1} parent=23 // pred_region
          %p424 = scmp.lt.s32.totalorder %s21, 3
          %s425 = scalar_select %p424, %s21, 3
          %s426 = scalar_lea.vmem %s2, %s425
        $region28: #{vgcn_blocks.1} parent=23 // pred_fallthru
          _
        // Predicated region
        $region29: #{vgcn_blocks.1} parent=23 // pred_check
          %p427 = pneg %p109
        $region30: #{vgcn_blocks.1} parent=23 // pred_check_branch
          %429 = sbr.rel (%p427) target = $region32
        $region31: #{vgcn_blocks.1} parent=23 // pred_region
          %p430 = scmp.lt.s32.totalorder %s21, 3
          %s431 = scalar_select %p430, %s21, 3
          %s432 = scalar_lea.vmem %s3, %s431
        $region32: #{vgcn_blocks.1} parent=23 // pred_fallthru
          _
        // Predicated region
        $region33: #{vgcn_blocks.1} parent=23 // pred_check
          %p433 = pneg %p135
        $region34: #{vgcn_blocks.1} parent=23 // pred_check_branch
          %435 = sbr.rel (%p433) target = $region36
        $region35: #{vgcn_blocks.1} parent=23 // pred_region
          %p436 = scmp.lt.s32.totalorder %s21, 3
          %s437 = scalar_select %p436, %s21, 3
          %s438 = smul.addr %s437, 16
          %s439 = smul.addr %s438, 8
          %s440 = scalar_lea.vmem %s4, %s439
        $region36: #{vgcn_blocks.1} parent=23 // pred_fallthru
          _
        // Predicated region
        $region37: #{vgcn_blocks.1} parent=23 // pred_check
          %p441 = pneg %p161
        $region38: #{vgcn_blocks.1} parent=23 // pred_check_branch
          %443 = sbr.rel (%p441) target = $region40
        $region39: #{vgcn_blocks.1} parent=23 // pred_region
          %p444 = scmp.lt.s32.totalorder %s21, 3
          %s445 = scalar_select %p444, %s21, 3
          %s446 = smul.addr %s445, 2
          %s447 = scalar_lea.vmem %s5, %s446
        $region40: #{vgcn_blocks.1} parent=23 // pred_fallthru
          _
        // Predicated region
        $region41: #{vgcn_blocks.1} parent=23 // pred_check
          %p448 = pneg %p187
        $region42: #{vgcn_blocks.1} parent=23 // pred_check_branch
          %450 = sbr.rel (%p448) target = $region44
        $region43: #{vgcn_blocks.1} parent=23 // pred_region
          %p451 = scmp.lt.s32.totalorder %s21, 3
          %s452 = scalar_select %p451, %s21, 3
          %s453 = smul.addr %s452, 8
          %s454 = smul.addr %s453, 8
          %s455 = scalar_lea.vmem %s6, %s454
        $region44: #{vgcn_blocks.1} parent=23 // pred_fallthru
          _
        // Predicated region
        $region45: #{vgcn_blocks.1} parent=23 // pred_check
          %p456 = pneg %p213
        $region46: #{vgcn_blocks.1} parent=23 // pred_check_branch
          %458 = sbr.rel (%p456) target = $region48
        $region47: #{vgcn_blocks.1} parent=23 // pred_region
          %p459 = scmp.lt.s32.totalorder %s21, 3
          %s460 = scalar_select %p459, %s21, 3
          %s461 = scalar_lea.vmem %s7, %s460
        $region48: #{vgcn_blocks.1} parent=23 // pred_fallthru
          _
        // Predicated region
        $region49: #{vgcn_blocks.1} parent=23 // pred_check
          %p462 = pneg %p239
        $region50: #{vgcn_blocks.1} parent=23 // pred_check_branch
          %464 = sbr.rel (%p462) target = $region52
        $region51: #{vgcn_blocks.1} parent=23 // pred_region
          %p465 = scmp.lt.s32.totalorder %s21, 3
          %s466 = scalar_select %p465, %s21, 3
          %s467 = scalar_lea.vmem %s8, %s466
        $region52: #{vgcn_blocks.1} parent=23 // pred_fallthru
          _
        // Predicated region
        $region53: #{vgcn_blocks.1} parent=23 // pred_check
          %p468 = pneg %p265
        $region54: #{vgcn_blocks.1} parent=23 // pred_check_branch
          %470 = sbr.rel (%p468) target = $region56
        $region55: #{vgcn_blocks.1} parent=23 // pred_region
          %p471 = scmp.lt.s32.totalorder %s21, 3
          %s472 = scalar_select %p471, %s21, 3
          %s473 = scalar_lea.vmem %s9, %s472
        $region56: #{vgcn_blocks.1} parent=23 // pred_fallthru
          _
        // Predicated region
        $region57: #{vgcn_blocks.1} parent=23 // pred_check
          %p474 = pneg %p291
        $region58: #{vgcn_blocks.1} parent=23 // pred_check_branch
          %476 = sbr.rel (%p474) target = $region60
        $region59: #{vgcn_blocks.1} parent=23 // pred_region
          %p477 = scmp.lt.s32.totalorder %s21, 3
          %s478 = scalar_select %p477, %s21, 3
          %s479 = smul.addr %s478, 16
          %s480 = smul.addr %s479, 8
          %s481 = scalar_lea.vmem %s10, %s480
        $region60: #{vgcn_blocks.1} parent=23 // pred_fallthru
          _
        // Predicated region
        $region61: #{vgcn_blocks.1} parent=23 // pred_check
          %p482 = pneg %p317
        $region62: #{vgcn_blocks.1} parent=23 // pred_check_branch
          %484 = sbr.rel (%p482) target = $region64
        $region63: #{vgcn_blocks.1} parent=23 // pred_region
          %p485 = scmp.lt.s32.totalorder %s21, 3
          %s486 = scalar_select %p485, %s21, 3
          %s487 = smul.addr %s486, 2
          %s488 = scalar_lea.vmem %s11, %s487
        $region64: #{vgcn_blocks.1} parent=23 // pred_fallthru
          _
        // Predicated region
        $region65: #{vgcn_blocks.1} parent=23 // pred_check
          %p489 = pneg %p343
        $region66: #{vgcn_blocks.1} parent=23 // pred_check_branch
          %491 = sbr.rel (%p489) target = $region68
        $region67: #{vgcn_blocks.1} parent=23 // pred_region
          %p492 = scmp.lt.s32.totalorder %s21, 3
          %s493 = scalar_select %p492, %s21, 3
          %s494 = smul.addr %s493, 32
          %s495 = smul.addr %s494, 8
          %s496 = scalar_lea.vmem %s12, %s495
        $region68: #{vgcn_blocks.1} parent=23 // pred_fallthru
          _
        // Predicated region
        $region69: #{vgcn_blocks.1} parent=23 // pred_check
          %p497 = pneg %p369
        $region70: #{vgcn_blocks.1} parent=23 // pred_check_branch
          %499 = sbr.rel (%p497) target = $region72
        $region71: #{vgcn_blocks.1} parent=23 // pred_region
          %p500 = scmp.lt.s32.totalorder %s21, 3
          %s501 = scalar_select %p500, %s21, 3
          %s502 = scalar_lea.vmem %s13, %s501
        $region72: #{vgcn_blocks.1} parent=23 // pred_fallthru
          _
      $region24: #{vgcn_blocks.1} parent=5 // pred_fallthru
        _
      %p503 = scmp.le.s32.totalorder 1, %s21
      %p504 = scmp.lt.s32.totalorder %s21, 5
      %p505 = pnand %p503, %p504
      %p506 = pneg %p505
      // Predicated region
      $region73: #{vgcn_blocks.1} parent=5 // pred_check
        _
      $region74: #{vgcn_blocks.1} parent=5 // pred_check_branch
        %508 = sbr.rel (%p505) target = $region76
      $region75: #{vgcn_blocks.1} parent=5 // pred_region
        %s509 = ssub.s32 %s21, 1
        %p510 = pneg %p42
        %p511 = pneg %p39
        %p512 = pneg %p63
        %p513 = pneg %p60
        %p514 = scmp.lt.s32.totalorder %s26, 3
        %s515 = scalar_select %p514, %s26, 3
        %s516 = scalar_lea.vmem %s2, %s515
        %p517 = pneg %p89
        %p518 = pneg %p86
        %p519 = scmp.lt.s32.totalorder %s26, 3
        %s520 = scalar_select %p519, %s26, 3
        %s521 = scalar_lea.vmem %s3, %s520
        %p522 = pneg %p115
        %p523 = pneg %p112
        %p524 = scmp.lt.s32.totalorder %s26, 3
        %s525 = scalar_select %p524, %s26, 3
        %s526 = smul.addr %s525, 16
        %s527 = smul.addr %s526, 8
        %s528 = scalar_lea.vmem %s4, %s527
        %p529 = pneg %p141
        %p530 = pneg %p138
        %p531 = scmp.lt.s32.totalorder %s26, 3
        %s532 = scalar_select %p531, %s26, 3
        %s533 = smul.addr %s532, 2
        %s534 = scalar_lea.vmem %s5, %s533
        %p535 = pneg %p167
        %p536 = pneg %p164
        %p537 = scmp.lt.s32.totalorder %s26, 3
        %s538 = scalar_select %p537, %s26, 3
        %s539 = smul.addr %s538, 8
        %s540 = smul.addr %s539, 8
        %s541 = scalar_lea.vmem %s6, %s540
        %p542 = pneg %p193
        %p543 = pneg %p190
        %p544 = scmp.lt.s32.totalorder %s26, 3
        %s545 = scalar_select %p544, %s26, 3
        %s546 = scalar_lea.vmem %s7, %s545
        %p547 = pneg %p219
        %p548 = pneg %p216
        %p549 = scmp.lt.s32.totalorder %s26, 3
        %s550 = scalar_select %p549, %s26, 3
        %s551 = scalar_lea.vmem %s8, %s550
        %p552 = pneg %p245
        %p553 = pneg %p242
        %p554 = scmp.lt.s32.totalorder %s26, 3
        %s555 = scalar_select %p554, %s26, 3
        %s556 = scalar_lea.vmem %s9, %s555
        %p557 = pneg %p271
        %p558 = pneg %p268
        %p559 = scmp.lt.s32.totalorder %s26, 3
        %s560 = scalar_select %p559, %s26, 3
        %s561 = smul.addr %s560, 16
        %s562 = smul.addr %s561, 8
        %s563 = scalar_lea.vmem %s10, %s562
        %p564 = pneg %p297
        %p565 = pneg %p294
        %p566 = scmp.lt.s32.totalorder %s26, 3
        %s567 = scalar_select %p566, %s26, 3
        %s568 = smul.addr %s567, 2
        %s569 = scalar_lea.vmem %s11, %s568
        %p570 = pneg %p323
        %p571 = pneg %p320
        %p572 = scmp.lt.s32.totalorder %s26, 3
        %s573 = scalar_select %p572, %s26, 3
        %s574 = smul.addr %s573, 32
        %s575 = smul.addr %s574, 8
        %s576 = scalar_lea.vmem %s12, %s575
        %p577 = pneg %p349
        %p578 = pneg %p346
        %p579 = scmp.lt.s32.totalorder %s26, 3
        %s580 = scalar_select %p579, %s26, 3
        %s581 = scalar_lea.vmem %s13, %s580
        %p582 = pneg %p375
        %p583 = pneg %p372
        %p584 = pneg %p396
        %p585 = pneg %p393
        %p586 = scmp.lt.s32.totalorder %s26, 3
        %s587 = scalar_select %p586, %s26, 3
        %s588 = scalar_lea.vmem %s2, %s587
        %p589 = scmp.lt.s32.totalorder %s26, 3
        %s590 = scalar_select %p589, %s26, 3
        %s591 = scalar_lea.vmem %s3, %s590
        %p592 = scmp.lt.s32.totalorder %s26, 3
        %s593 = scalar_select %p592, %s26, 3
        %s594 = smul.addr %s593, 16
        %s595 = smul.addr %s594, 8
        %s596 = scalar_lea.vmem %s4, %s595
        %p597 = scmp.lt.s32.totalorder %s26, 3
        %s598 = scalar_select %p597, %s26, 3
        %s599 = smul.addr %s598, 2
        %s600 = scalar_lea.vmem %s5, %s599
        %p601 = scmp.lt.s32.totalorder %s26, 3
        %s602 = scalar_select %p601, %s26, 3
        %s603 = smul.addr %s602, 8
        %s604 = smul.addr %s603, 8
        %s605 = scalar_lea.vmem %s6, %s604
        %p606 = scmp.lt.s32.totalorder %s26, 3
        %s607 = scalar_select %p606, %s26, 3
        %s608 = scalar_lea.vmem %s7, %s607
        %p609 = scmp.lt.s32.totalorder %s26, 3
        %s610 = scalar_select %p609, %s26, 3
        %s611 = scalar_lea.vmem %s8, %s610
        %p612 = scmp.lt.s32.totalorder %s26, 3
        %s613 = scalar_select %p612, %s26, 3
        %s614 = scalar_lea.vmem %s9, %s613
        %p615 = scmp.lt.s32.totalorder %s26, 3
        %s616 = scalar_select %p615, %s26, 3
        %s617 = smul.addr %s616, 16
        %s618 = smul.addr %s617, 8
        %s619 = scalar_lea.vmem %s10, %s618
        %p620 = scmp.lt.s32.totalorder %s26, 3
        %s621 = scalar_select %p620, %s26, 3
        %s622 = smul.addr %s621, 2
        %s623 = scalar_lea.vmem %s11, %s622
        %p624 = scmp.lt.s32.totalorder %s26, 3
        %s625 = scalar_select %p624, %s26, 3
        %s626 = smul.addr %s625, 32
        %s627 = smul.addr %s626, 8
        %s628 = scalar_lea.vmem %s12, %s627
        %p629 = scmp.lt.s32.totalorder %s26, 3
        %s630 = scalar_select %p629, %s26, 3
        %s631 = scalar_lea.vmem %s13, %s630
        %p632 = scmp.eq.s32.totalorder %s26, 0
        // Predicated region
        $region77: #{vgcn_blocks.1} parent=75 // pred_check
          %p633 = pneg %p632
        $region78: #{vgcn_blocks.1} parent=75 // pred_check_branch
          %635 = sbr.rel (%p633) target = $region80
        $region79: #{vgcn_blocks.1} parent=75 // pred_region
          %v636 = vld [vmem:[%s0] sm:$0xff]
          %v637 = vld [vmem:[%s0 + $0x8] sm:$0xff]
          %vm638 = vcmask 523264
          %639 = vst.msk [vmem:[#allocation2] sm:$0xff] %vm638, %v636
          %640 = vst.msk [vmem:[#allocation2 + $0x8] sm:$0xff] %vm638, %v637
        $region80: #{vgcn_blocks.1} parent=75 // pred_fallthru
          _
        %v641 = vld [vmem:[#allocation2] sm:$0xff]
        %v642 = vld [vmem:[#allocation2 + $0x8] sm:$0xff]
        %v643 = vld [vmem:[%s588] sm:$0x1]
        %v644 = vld [vmem:[%s591] sm:$0x1]
        %vm645 = vcmask 523264
        %v646 = vsel %vm645, %v641, 0.0
        %647 = vadd.xlane.f32.xlu0 %v646
        %v648 = vpop.xlane.xlu0 %647
        %v649 = vsel %vm645, %v642, 0.0
        %650 = vadd.xlane.f32.xlu0 %v649
        %v651 = vpop.xlane.xlu0 %650
        %v652 = vrcp.pop 64.0
        %v653 = vmul.f32 %v648, %v652
        %v654 = vmul.f32 %v651, %v652
        %v655 = vsub.f32 %v641, %v653
        %v656 = vsub.f32 %v642, %v654
        %v657 = vmul.f32 %v655, %v655
        %v658 = vmul.f32 %v656, %v656
        %v659 = vsel %vm645, %v657, 0.0
        %660 = vadd.xlane.f32.xlu0 %v659
        %v661 = vpop.xlane.xlu0 %660
        %v662 = vsel %vm645, %v658, 0.0
        %663 = vadd.xlane.f32.xlu0 %v662
        %v664 = vpop.xlane.xlu0 %663
        %v665 = vmul.f32 %v661, %v652
        %v666 = vmul.f32 %v664, %v652
        %v667 = vadd.f32 %v665, 1e-06
        %v668 = vadd.f32 %v666, 1e-06
        %v669 = vrsqrt.pop %v667
        %v670 = vrsqrt.pop %v668
        %v671 = vmul.f32 %v655, %v669
        %v672 = vmul.f32 %v656, %v670
        %v674 = vlaneseq
        %v675 = vshrl.u32 %v674, 7
        %v676 = vsub.s32 0, %v675
        %v677 = vrot.slane %v643, %v676
        %v679 = vmul.f32 %v671, %v677
        %v680 = vmul.f32 %v672, %v677
        %v682 = vlaneseq
        %v683 = vshrl.u32 %v682, 7
        %v684 = vsub.s32 0, %v683
        %v685 = vrot.slane %v644, %v684
        %v687 = vadd.f32 %v679, %v685
        %v688 = vadd.f32 %v680, %v685
        %v689 = vld [vmem:[%s596] sm:$0xff]
        %v690 = vld [vmem:[%s596 + $0x8] sm:$0xff]
        %v691 = vld [vmem:[%s596 + $0x10] sm:$0xff]
        %v692 = vld [vmem:[%s596 + $0x18] sm:$0xff]
        %v693 = vld [vmem:[%s596 + $0x20] sm:$0xff]
        %v694 = vld [vmem:[%s596 + $0x28] sm:$0xff]
        %v695 = vld [vmem:[%s596 + $0x30] sm:$0xff]
        %v696 = vld [vmem:[%s596 + $0x38] sm:$0xff]
        %v697 = vld [vmem:[%s596 + $0x40] sm:$0xff]
        %v698 = vld [vmem:[%s596 + $0x48] sm:$0xff]
        %v699 = vld [vmem:[%s596 + $0x50] sm:$0xff]
        %v700 = vld [vmem:[%s596 + $0x58] sm:$0xff]
        %v701 = vld [vmem:[%s596 + $0x60] sm:$0xff]
        %v702 = vld [vmem:[%s596 + $0x68] sm:$0xff]
        %v703 = vld [vmem:[%s596 + $0x70] sm:$0xff]
        %v704 = vld [vmem:[%s596 + $0x78] sm:$0xff]
        %v705 = vld [vmem:[%s600] sm:$0x3]
        %v707 = vlaneseq
        %v708 = vshrl.u32 %v707, 7
        %v709 = vsub.s32 0, %v708
        %v710 = vrot.slane %v705, %v709
        %v711 = vlaneseq
        %v712 = vshrl.u32 %v711, 7
        %v713 = vsub.s32 1, %v712
        %v714 = vrot.slane %v705, %v713
        %v718 = vsel %vm645, %v687, 0
        %v721 = vsel %vm645, %v688, 0
        %723 = vmatprep.subr.mxu0 %v690
        %724 = vmatpush1.msra.mxu0 %v689
        %725 = vmatprep.subr.mxu0 %v692
        %726 = vmatpush1.msra.mxu0 %v691
        %727 = vmatprep.subr.mxu0 %v694
        %728 = vmatpush1.msra.mxu0 %v693
        %729 = vmatprep.subr.mxu0 %v696
        %730 = vmatpush1.msra.mxu0 %v695
        %731 = vmatprep.subr.mxu0 %v698
        %732 = vmatpush1.msra.mxu0 %v697
        %733 = vmatprep.subr.mxu0 %v700
        %734 = vmatpush1.msra.mxu0 %v699
        %735 = vmatprep.subr.mxu0 %v702
        %736 = vmatpush1.msra.mxu0 %v701
        %737 = vmatprep.subr.mxu0 %v704
        %738 = vmatpush1.msra.mxu0 %v703
        %739 = vmatprep.subr.mxu0 0.0
        %740 = vmatpush1.msra.mxu0 0.0
        %741 = vmatprep.subr.mxu0 0.0
        %742 = vmatpush1.msra.mxu0 0.0
        %743 = vmatprep.subr.mxu0 0.0
        %744 = vmatpush1.msra.mxu0 0.0
        %745 = vmatprep.subr.mxu0 0.0
        %746 = vmatpush1.msra.mxu0 0.0
        %747 = vmatprep.subr.mxu0 0.0
        %748 = vmatpush1.msra.mxu0 0.0
        %749 = vmatprep.subr.mxu0 0.0
        %750 = vmatpush1.msra.mxu0 0.0
        %751 = vmatprep.subr.mxu0 0.0
        %752 = vmatpush1.msra.mxu0 0.0
        %753 = vmatprep.subr.mxu0 0.0
        %754 = vmatpush1.msra.mxu0 0.0
        %755 = vmatprep.subr.mxu0 0.0
        %756 = vmatpush1.msra.mxu0 0.0
        %757 = vmatprep.subr.mxu0 0.0
        %758 = vmatpush1.msra.mxu0 0.0
        %759 = vmatprep.subr.mxu0 0.0
        %760 = vmatpush1.msra.mxu0 0.0
        %761 = vmatprep.subr.mxu0 0.0
        %762 = vmatpush1.msra.mxu0 0.0
        %763 = vmatprep.subr.mxu0 0.0
        %764 = vmatpush1.msra.mxu0 0.0
        %765 = vmatprep.subr.mxu0 0.0
        %766 = vmatpush1.msra.mxu0 0.0
        %767 = vmatprep.subr.mxu0 0.0
        %768 = vmatpush1.msra.mxu0 0.0
        %769 = vmatprep.subr.mxu0 0.0
        %770 = vmatpush1.msra.mxu0 0.0
        %771 = vmatprep.subr.mxu0 0.0
        %772 = vmatpush1.msra.mxu0 0.0
        %773 = vmatprep.subr.mxu0 0.0
        %774 = vmatpush1.msra.mxu0 0.0
        %775 = vmatprep.subr.mxu0 0.0
        %776 = vmatpush1.msra.mxu0 0.0
        %777 = vmatprep.subr.mxu0 0.0
        %778 = vmatpush1.msra.mxu0 0.0
        %779 = vmatprep.subr.mxu0 0.0
        %780 = vmatpush1.msra.mxu0 0.0
        %781 = vmatprep.subr.mxu0 0.0
        %782 = vmatpush1.msra.mxu0 0.0
        %783 = vmatprep.subr.mxu0 0.0
        %784 = vmatpush1.msra.mxu0 0.0
        %785 = vmatprep.subr.mxu0 0.0
        %786 = vmatpush1.msra.mxu0 0.0
        %787 = vmatprep.mubr.f32.mxu0 0.0
        %788 = vmatmul.mubr.f32.gmra.mrb[0].mxu0 %v718
        %v789 = vpop.f32.mrb[0].mxu0
        %v790 = vadd.f32 %v710, %v789
        %v791 = vpop.f32.mrb[0].mxu0
        %v792 = vadd.f32 %v714, %v791
        %793 = vmatprep.mubr.f32.mxu0 0.0
        %794 = vmatmul.mubr.f32.gmra.mrb[0].mxu0 %v721
        %v795 = vpop.f32.mrb[0].mxu0
        %v796 = vadd.f32 %v710, %v795
        %v797 = vpop.f32.mrb[0].mxu0
        %v798 = vadd.f32 %v714, %v797
        %799 = vdwg.mxu0
        %802 = vrot.lane.b32.xlu0 %v790, 112
        %v803 = vpop.permute.xlu0 %802
        %804 = vrot.lane.b32.xlu0 %v796, 112
        %v805 = vpop.permute.xlu0 %804
        %806 = vrot.lane.b32.xlu0 %v790, 96
        %v807 = vpop.permute.xlu0 %806
        %808 = vrot.lane.b32.xlu0 %v796, 96
        %v809 = vpop.permute.xlu0 %808
        %810 = vrot.lane.b32.xlu0 %v790, 80
        %v811 = vpop.permute.xlu0 %810
        %812 = vrot.lane.b32.xlu0 %v796, 80
        %v813 = vpop.permute.xlu0 %812
        %816 = vrot.lane.b32.xlu0 %v792, 112
        %v817 = vpop.permute.xlu0 %816
        %818 = vrot.lane.b32.xlu0 %v798, 112
        %v819 = vpop.permute.xlu0 %818
        %822 = vrot.lane.b32.xlu0 %v792, 96
        %v823 = vpop.permute.xlu0 %822
        %824 = vrot.lane.b32.xlu0 %v798, 96
        %v825 = vpop.permute.xlu0 %824
        %828 = vrot.lane.b32.xlu0 %v792, 80
        %v829 = vpop.permute.xlu0 %828
        %830 = vrot.lane.b32.xlu0 %v798, 80
        %v831 = vpop.permute.xlu0 %830
        %v834 = vld [vmem:[%s1] sm:$0xff]
        %v835 = vld [vmem:[%s1 + $0x8] sm:$0xff]
        %v836 = vld [vmem:[%s1 + $0x10] sm:$0xff]
        %v837 = vld [vmem:[%s1 + $0x18] sm:$0xff]
        %v838 = vld [vmem:[%s1 + $0x20] sm:$0xff]
        %v839 = vld [vmem:[%s1 + $0x28] sm:$0xff]
        %v840 = vld [vmem:[%s1 + $0x30] sm:$0xff]
        %v841 = vld [vmem:[%s1 + $0x38] sm:$0xff]
        %842 = vrot.lane.b32.xlu0 %v790, 64
        %v843 = vpop.permute.xlu0 %842
        %844 = vrot.lane.b32.xlu0 %v796, 64
        %v845 = vpop.permute.xlu0 %844
        %846 = vrot.lane.b32.xlu0 %v803, 64
        %v847 = vpop.permute.xlu0 %846
        %848 = vrot.lane.b32.xlu0 %v805, 64
        %v849 = vpop.permute.xlu0 %848
        %850 = vrot.lane.b32.xlu0 %v807, 64
        %v851 = vpop.permute.xlu0 %850
        %852 = vrot.lane.b32.xlu0 %v809, 64
        %v853 = vpop.permute.xlu0 %852
        %854 = vrot.lane.b32.xlu0 %v811, 64
        %v855 = vpop.permute.xlu0 %854
        %856 = vrot.lane.b32.xlu0 %v813, 64
        %v857 = vpop.permute.xlu0 %856
        %vm858 = vcmask 130048
        %v859 = vsel %vm858, %v790, 0
        %v861 = vsel %vm858, %v796, 0
        %v863 = vsel %vm858, %v803, 0
        %v865 = vsel %vm858, %v805, 0
        %v867 = vsel %vm858, %v807, 0
        %v869 = vsel %vm858, %v809, 0
        %v871 = vsel %vm858, %v811, 0
        %v873 = vsel %vm858, %v813, 0
        %v875 = vsel %vm858, %v843, 0
        %v877 = vsel %vm858, %v845, 0
        %v879 = vsel %vm858, %v847, 0
        %v881 = vsel %vm858, %v849, 0
        %v883 = vsel %vm858, %v851, 0
        %v885 = vsel %vm858, %v853, 0
        %v887 = vsel %vm858, %v855, 0
        %v889 = vsel %vm858, %v857, 0
        %891 = vmatprep.subr.mxu0 0.0
        %892 = vmatpush1.xpose.msra.mxu0 %v875
        %893 = vmatprep.subr.mxu0 0.0
        %894 = vmatpush1.xpose.msra.mxu0 %v877
        %895 = vmatprep.subr.mxu0 0.0
        %896 = vmatpush1.xpose.msra.mxu0 %v879
        %897 = vmatprep.subr.mxu0 0.0
        %898 = vmatpush1.xpose.msra.mxu0 %v881
        %899 = vmatprep.subr.mxu0 0.0
        %900 = vmatpush1.xpose.msra.mxu0 %v883
        %901 = vmatprep.subr.mxu0 0.0
        %902 = vmatpush1.xpose.msra.mxu0 %v885
        %903 = vmatprep.subr.mxu0 0.0
        %904 = vmatpush1.xpose.msra.mxu0 %v887
        %905 = vmatprep.subr.mxu0 0.0
        %906 = vmatpush1.xpose.msra.mxu0 %v889
        %907 = vmatprep.subr.mxu0 0.0
        %908 = vmatpush1.xpose.msra.mxu0 0.0
        %909 = vmatprep.subr.mxu0 0.0
        %910 = vmatpush1.xpose.msra.mxu0 0.0
        %911 = vmatprep.subr.mxu0 0.0
        %912 = vmatpush1.xpose.msra.mxu0 0.0
        %913 = vmatprep.subr.mxu0 0.0
        %914 = vmatpush1.xpose.msra.mxu0 0.0
        %915 = vmatprep.subr.mxu0 0.0
        %916 = vmatpush1.xpose.msra.mxu0 0.0
        %917 = vmatprep.subr.mxu0 0.0
        %918 = vmatpush1.xpose.msra.mxu0 0.0
        %919 = vmatprep.subr.mxu0 0.0
        %920 = vmatpush1.xpose.msra.mxu0 0.0
        %921 = vmatprep.subr.mxu0 0.0
        %922 = vmatpush1.xpose.msra.mxu0 0.0
        %923 = vmatprep.subr.mxu0 0.0
        %924 = vmatpush1.xpose.msra.mxu0 0.0
        %925 = vmatprep.subr.mxu0 0.0
        %926 = vmatpush1.xpose.msra.mxu0 0.0
        %927 = vmatprep.subr.mxu0 0.0
        %928 = vmatpush1.xpose.msra.mxu0 0.0
        %929 = vmatprep.subr.mxu0 0.0
        %930 = vmatpush1.xpose.msra.mxu0 0.0
        %931 = vmatprep.subr.mxu0 0.0
        %932 = vmatpush1.xpose.msra.mxu0 0.0
        %933 = vmatprep.subr.mxu0 0.0
        %934 = vmatpush1.xpose.msra.mxu0 0.0
        %935 = vmatprep.subr.mxu0 0.0
        %936 = vmatpush1.xpose.msra.mxu0 0.0
        %937 = vmatprep.subr.mxu0 0.0
        %938 = vmatpush1.xpose.msra.mxu0 0.0
        %939 = vmatprep.subr.mxu0 0.0
        %940 = vmatpush1.xpose.msra.mxu0 0.0
        %941 = vmatprep.subr.mxu0 0.0
        %942 = vmatpush1.xpose.msra.mxu0 0.0
        %943 = vmatprep.subr.mxu0 0.0
        %944 = vmatpush1.xpose.msra.mxu0 0.0
        %945 = vmatprep.subr.mxu0 0.0
        %946 = vmatpush1.xpose.msra.mxu0 0.0
        %947 = vmatprep.subr.mxu0 0.0
        %948 = vmatpush1.xpose.msra.mxu0 0.0
        %949 = vmatprep.subr.mxu0 0.0
        %950 = vmatpush1.xpose.msra.mxu0 0.0
        %951 = vmatprep.subr.mxu0 0.0
        %952 = vmatpush1.xpose.msra.mxu0 0.0
        %953 = vmatprep.subr.mxu0 0.0
        %954 = vmatpush1.xpose.msra.mxu0 0.0
        %955 = vmatprep.mubr.f32.mxu0 0.0
        %956 = vmatmul.mubr.f32.gmra.mrb[0].mxu0 %v859
        %v957 = vpop.f32.mrb[0].mxu0
        %v958 = vadd.f32 %v834, %v957
        %v959 = vpop.f32.mrb[0].mxu0
        %960 = vmatprep.mubr.f32.mxu0 0.0
        %961 = vmatmul.mubr.f32.gmra.mrb[0].mxu0 %v861
        %v962 = vpop.f32.mrb[0].mxu0
        %v963 = vadd.f32 %v835, %v962
        %v964 = vpop.f32.mrb[0].mxu0
        %965 = vmatprep.mubr.f32.mxu0 0.0
        %966 = vmatmul.mubr.f32.gmra.mrb[0].mxu0 %v863
        %v967 = vpop.f32.mrb[0].mxu0
        %v968 = vadd.f32 %v836, %v967
        %v969 = vpop.f32.mrb[0].mxu0
        %970 = vmatprep.mubr.f32.mxu0 0.0
        %971 = vmatmul.mubr.f32.gmra.mrb[0].mxu0 %v865
        %v972 = vpop.f32.mrb[0].mxu0
        %v973 = vadd.f32 %v837, %v972
        %v974 = vpop.f32.mrb[0].mxu0
        %975 = vmatprep.mubr.f32.mxu0 0.0
        %976 = vmatmul.mubr.f32.gmra.mrb[0].mxu0 %v867
        %v977 = vpop.f32.mrb[0].mxu0
        %v978 = vadd.f32 %v838, %v977
        %v979 = vpop.f32.mrb[0].mxu0
        %980 = vmatprep.mubr.f32.mxu0 0.0
        %981 = vmatmul.mubr.f32.gmra.mrb[0].mxu0 %v869
        %v982 = vpop.f32.mrb[0].mxu0
        %v983 = vadd.f32 %v839, %v982
        %v984 = vpop.f32.mrb[0].mxu0
        %985 = vmatprep.mubr.f32.mxu0 0.0
        %986 = vmatmul.mubr.f32.gmra.mrb[0].mxu0 %v871
        %v987 = vpop.f32.mrb[0].mxu0
        %v988 = vadd.f32 %v840, %v987
        %v989 = vpop.f32.mrb[0].mxu0
        %990 = vmatprep.mubr.f32.mxu0 0.0
        %991 = vmatmul.mubr.f32.gmra.mrb[0].mxu0 %v873
        %v992 = vpop.f32.mrb[0].mxu0
        %v993 = vadd.f32 %v841, %v992
        %v994 = vpop.f32.mrb[0].mxu0
        %995 = vdwg.mxu0
        %v996 = vsel %vm645, %v958, -inf
        %997 = vmax.xlane.f32.xlu0 %v996
        %v998 = vpop.xlane.xlu0 %997
        %v999 = vsel %vm645, %v963, -inf
        %1000 = vmax.xlane.f32.xlu0 %v999
        %v1001 = vpop.xlane.xlu0 %1000
        %v1002 = vsel %vm645, %v968, -inf
        %1003 = vmax.xlane.f32.xlu0 %v1002
        %v1004 = vpop.xlane.xlu0 %1003
        %v1005 = vsel %vm645, %v973, -inf
        %1006 = vmax.xlane.f32.xlu0 %v1005
        %v1007 = vpop.xlane.xlu0 %1006
        %v1008 = vsel %vm645, %v978, -inf
        %1009 = vmax.xlane.f32.xlu0 %v1008
        %v1010 = vpop.xlane.xlu0 %1009
        %v1011 = vsel %vm645, %v983, -inf
        %1012 = vmax.xlane.f32.xlu0 %v1011
        %v1013 = vpop.xlane.xlu0 %1012
        %v1014 = vsel %vm645, %v988, -inf
        %1015 = vmax.xlane.f32.xlu0 %v1014
        %v1016 = vpop.xlane.xlu0 %1015
        %v1017 = vsel %vm645, %v993, -inf
        %1018 = vmax.xlane.f32.xlu0 %v1017
        %v1019 = vpop.xlane.xlu0 %1018
        %v1020 = vsub.f32 %v958, %v998
        %v1021 = vsub.f32 %v963, %v1001
        %v1022 = vsub.f32 %v968, %v1004
        %v1023 = vsub.f32 %v973, %v1007
        %v1024 = vsub.f32 %v978, %v1010
        %v1025 = vsub.f32 %v983, %v1013
        %v1026 = vsub.f32 %v988, %v1016
        %v1027 = vsub.f32 %v993, %v1019
        %v1028 = vmul.f32 %v1020, 1.442695
        %v1029 = vpow.pop %v1028
        %v1030 = vmul.f32 %v1021, 1.442695
        %v1031 = vpow.pop %v1030
        %v1032 = vmul.f32 %v1022, 1.442695
        %v1033 = vpow.pop %v1032
        %v1034 = vmul.f32 %v1023, 1.442695
        %v1035 = vpow.pop %v1034
        %v1036 = vmul.f32 %v1024, 1.442695
        %v1037 = vpow.pop %v1036
        %v1038 = vmul.f32 %v1025, 1.442695
        %v1039 = vpow.pop %v1038
        %v1040 = vmul.f32 %v1026, 1.442695
        %v1041 = vpow.pop %v1040
        %v1042 = vmul.f32 %v1027, 1.442695
        %v1043 = vpow.pop %v1042
        %v1044 = vsel %vm645, %v1029, 0.0
        %1045 = vadd.xlane.f32.xlu0 %v1044
        %v1046 = vpop.xlane.xlu0 %1045
        %v1047 = vsel %vm645, %v1031, 0.0
        %1048 = vadd.xlane.f32.xlu0 %v1047
        %v1049 = vpop.xlane.xlu0 %1048
        %v1050 = vsel %vm645, %v1033, 0.0
        %1051 = vadd.xlane.f32.xlu0 %v1050
        %v1052 = vpop.xlane.xlu0 %1051
        %v1053 = vsel %vm645, %v1035, 0.0
        %1054 = vadd.xlane.f32.xlu0 %v1053
        %v1055 = vpop.xlane.xlu0 %1054
        %v1056 = vsel %vm645, %v1037, 0.0
        %1057 = vadd.xlane.f32.xlu0 %v1056
        %v1058 = vpop.xlane.xlu0 %1057
        %v1059 = vsel %vm645, %v1039, 0.0
        %1060 = vadd.xlane.f32.xlu0 %v1059
        %v1061 = vpop.xlane.xlu0 %1060
        %v1062 = vsel %vm645, %v1041, 0.0
        %1063 = vadd.xlane.f32.xlu0 %v1062
        %v1064 = vpop.xlane.xlu0 %1063
        %v1065 = vsel %vm645, %v1043, 0.0
        %1066 = vadd.xlane.f32.xlu0 %v1065
        %v1067 = vpop.xlane.xlu0 %1066
        %v1068 = vrcp.pop %v1046
        %v1069 = vmul.f32 %v1029, %v1068
        %v1070 = vrcp.pop %v1049
        %v1071 = vmul.f32 %v1031, %v1070
        %v1072 = vrcp.pop %v1052
        %v1073 = vmul.f32 %v1033, %v1072
        %v1074 = vrcp.pop %v1055
        %v1075 = vmul.f32 %v1035, %v1074
        %v1076 = vrcp.pop %v1058
        %v1077 = vmul.f32 %v1037, %v1076
        %v1078 = vrcp.pop %v1061
        %v1079 = vmul.f32 %v1039, %v1078
        %v1080 = vrcp.pop %v1064
        %v1081 = vmul.f32 %v1041, %v1080
        %v1082 = vrcp.pop %v1067
        %v1083 = vmul.f32 %v1043, %v1082
        %v1085 = vsel %vm645, %v1069, 0
        %v1088 = vsel %vm645, %v1071, 0
        %v1091 = vsel %vm645, %v1073, 0
        %v1094 = vsel %vm645, %v1075, 0
        %v1097 = vsel %vm645, %v1077, 0
        %v1100 = vsel %vm645, %v1079, 0
        %v1103 = vsel %vm645, %v1081, 0
        %v1106 = vsel %vm645, %v1083, 0
        %1108 = vmatprep.subr.mxu0 0.0
        %1109 = vmatpush1.msra.mxu0 %v792
        %1110 = vmatprep.subr.mxu0 0.0
        %1111 = vmatpush1.msra.mxu0 %v798
        %1112 = vmatprep.subr.mxu0 0.0
        %1113 = vmatpush1.msra.mxu0 %v817
        %1114 = vmatprep.subr.mxu0 0.0
        %1115 = vmatpush1.msra.mxu0 %v819
        %1116 = vmatprep.subr.mxu0 0.0
        %1117 = vmatpush1.msra.mxu0 %v823
        %1118 = vmatprep.subr.mxu0 0.0
        %1119 = vmatpush1.msra.mxu0 %v825
        %1120 = vmatprep.subr.mxu0 0.0
        %1121 = vmatpush1.msra.mxu0 %v829
        %1122 = vmatprep.subr.mxu0 0.0
        %1123 = vmatpush1.msra.mxu0 %v831
        %1124 = vmatprep.subr.mxu0 0.0
        %1125 = vmatpush1.msra.mxu0 0.0
        %1126 = vmatprep.subr.mxu0 0.0
        %1127 = vmatpush1.msra.mxu0 0.0
        %1128 = vmatprep.subr.mxu0 0.0
        %1129 = vmatpush1.msra.mxu0 0.0
        %1130 = vmatprep.subr.mxu0 0.0
        %1131 = vmatpush1.msra.mxu0 0.0
        %1132 = vmatprep.subr.mxu0 0.0
        %1133 = vmatpush1.msra.mxu0 0.0
        %1134 = vmatprep.subr.mxu0 0.0
        %1135 = vmatpush1.msra.mxu0 0.0
        %1136 = vmatprep.subr.mxu0 0.0
        %1137 = vmatpush1.msra.mxu0 0.0
        %1138 = vmatprep.subr.mxu0 0.0
        %1139 = vmatpush1.msra.mxu0 0.0
        %1140 = vmatprep.subr.mxu0 0.0
        %1141 = vmatpush1.msra.mxu0 0.0
        %1142 = vmatprep.subr.mxu0 0.0
        %1143 = vmatpush1.msra.mxu0 0.0
        %1144 = vmatprep.subr.mxu0 0.0
        %1145 = vmatpush1.msra.mxu0 0.0
        %1146 = vmatprep.subr.mxu0 0.0
        %1147 = vmatpush1.msra.mxu0 0.0
        %1148 = vmatprep.subr.mxu0 0.0
        %1149 = vmatpush1.msra.mxu0 0.0
        %1150 = vmatprep.subr.mxu0 0.0
        %1151 = vmatpush1.msra.mxu0 0.0
        %1152 = vmatprep.subr.mxu0 0.0
        %1153 = vmatpush1.msra.mxu0 0.0
        %1154 = vmatprep.subr.mxu0 0.0
        %1155 = vmatpush1.msra.mxu0 0.0
        %1156 = vmatprep.subr.mxu0 0.0
        %1157 = vmatpush1.msra.mxu0 0.0
        %1158 = vmatprep.subr.mxu0 0.0
        %1159 = vmatpush1.msra.mxu0 0.0
        %1160 = vmatprep.subr.mxu0 0.0
        %1161 = vmatpush1.msra.mxu0 0.0
        %1162 = vmatprep.subr.mxu0 0.0
        %1163 = vmatpush1.msra.mxu0 0.0
        %1164 = vmatprep.subr.mxu0 0.0
        %1165 = vmatpush1.msra.mxu0 0.0
        %1166 = vmatprep.subr.mxu0 0.0
        %1167 = vmatpush1.msra.mxu0 0.0
        %1168 = vmatprep.subr.mxu0 0.0
        %1169 = vmatpush1.msra.mxu0 0.0
        %1170 = vmatprep.subr.mxu0 0.0
        %1171 = vmatpush1.msra.mxu0 0.0
        %1172 = vmatprep.mubr.f32.mxu0 0.0
        %1173 = vmatmul.mubr.f32.gmra.mrb[0].mxu0 %v1085
        %v1174 = vpop.f32.mrb[0].mxu0
        %v1175 = vadd.f32 0.0, %v1174
        %v1176 = vpop.f32.mrb[0].mxu0
        %1177 = vmatprep.mubr.f32.mxu0 0.0
        %1178 = vmatmul.mubr.f32.gmra.mrb[0].mxu0 %v1088
        %v1179 = vpop.f32.mrb[0].mxu0
        %v1180 = vadd.f32 0.0, %v1179
        %v1181 = vpop.f32.mrb[0].mxu0
        %1182 = vmatprep.mubr.f32.mxu0 0.0
        %1183 = vmatmul.mubr.f32.gmra.mrb[0].mxu0 %v1091
        %v1184 = vpop.f32.mrb[0].mxu0
        %v1185 = vadd.f32 0.0, %v1184
        %v1186 = vpop.f32.mrb[0].mxu0
        %1187 = vmatprep.mubr.f32.mxu0 0.0
        %1188 = vmatmul.mubr.f32.gmra.mrb[0].mxu0 %v1094
        %v1189 = vpop.f32.mrb[0].mxu0
        %v1190 = vadd.f32 0.0, %v1189
        %v1191 = vpop.f32.mrb[0].mxu0
        %1192 = vmatprep.mubr.f32.mxu0 0.0
        %1193 = vmatmul.mubr.f32.gmra.mrb[0].mxu0 %v1097
        %v1194 = vpop.f32.mrb[0].mxu0
        %v1195 = vadd.f32 0.0, %v1194
        %v1196 = vpop.f32.mrb[0].mxu0
        %1197 = vmatprep.mubr.f32.mxu0 0.0
        %1198 = vmatmul.mubr.f32.gmra.mrb[0].mxu0 %v1100
        %v1199 = vpop.f32.mrb[0].mxu0
        %v1200 = vadd.f32 0.0, %v1199
        %v1201 = vpop.f32.mrb[0].mxu0
        %1202 = vmatprep.mubr.f32.mxu0 0.0
        %1203 = vmatmul.mubr.f32.gmra.mrb[0].mxu0 %v1103
        %v1204 = vpop.f32.mrb[0].mxu0
        %v1205 = vadd.f32 0.0, %v1204
        %v1206 = vpop.f32.mrb[0].mxu0
        %1207 = vmatprep.mubr.f32.mxu0 0.0
        %1208 = vmatmul.mubr.f32.gmra.mrb[0].mxu0 %v1106
        %v1209 = vpop.f32.mrb[0].mxu0
        %v1210 = vadd.f32 0.0, %v1209
        %v1211 = vpop.f32.mrb[0].mxu0
        %1212 = vdwg.mxu0
        %1215 = vrot.lane.b32.xlu0 %v1185, 16
        %v1216 = vpop.permute.xlu0 %1215
        %1217 = vrot.lane.b32.xlu0 %v1190, 16
        %v1218 = vpop.permute.xlu0 %1217
        %1223 = vrot.lane.b32.xlu0 %v1195, 32
        %v1224 = vpop.permute.xlu0 %1223
        %1225 = vrot.lane.b32.xlu0 %v1200, 32
        %v1226 = vpop.permute.xlu0 %1225
        %1231 = vrot.lane.b32.xlu0 %v1205, 48
        %v1232 = vpop.permute.xlu0 %1231
        %1233 = vrot.lane.b32.xlu0 %v1210, 48
        %v1234 = vpop.permute.xlu0 %1233
        %v1237 = vsel %vm858, %v1175, %v1216
        %v1238 = vsel %vm858, %v1180, %v1218
        %vm1239 = vcmask 261120
        %v1240 = vsel %vm1239, %v1237, %v1224
        %v1241 = vsel %vm1239, %v1238, %v1226
        %vm1242 = vcmask 392192
        %v1243 = vsel %vm1242, %v1240, %v1232
        %v1244 = vsel %vm1242, %v1241, %v1234
        %v1245 = vld [vmem:[%s605] sm:$0xff]
        %v1246 = vld [vmem:[%s605 + $0x8] sm:$0xff]
        %v1247 = vld [vmem:[%s605 + $0x10] sm:$0xff]
        %v1248 = vld [vmem:[%s605 + $0x18] sm:$0xff]
        %v1249 = vld [vmem:[%s605 + $0x20] sm:$0xff]
        %v1250 = vld [vmem:[%s605 + $0x28] sm:$0xff]
        %v1251 = vld [vmem:[%s605 + $0x30] sm:$0xff]
        %v1252 = vld [vmem:[%s605 + $0x38] sm:$0xff]
        %v1253 = vld [vmem:[%s608] sm:$0x1]
        %v1255 = vlaneseq
        %v1256 = vshrl.u32 %v1255, 7
        %v1257 = vsub.s32 0, %v1256
        %v1258 = vrot.slane %v1253, %v1257
        %v1261 = vsel %vm645, %v1243, 0
        %v1264 = vsel %vm645, %v1244, 0
        %1266 = vmatprep.subr.mxu0 0.0
        %1267 = vmatpush1.msra.mxu0 %v1245
        %1268 = vmatprep.subr.mxu0 0.0
        %1269 = vmatpush1.msra.mxu0 %v1246
        %1270 = vmatprep.subr.mxu0 0.0
        %1271 = vmatpush1.msra.mxu0 %v1247
        %1272 = vmatprep.subr.mxu0 0.0
        %1273 = vmatpush1.msra.mxu0 %v1248
        %1274 = vmatprep.subr.mxu0 0.0
        %1275 = vmatpush1.msra.mxu0 %v1249
        %1276 = vmatprep.subr.mxu0 0.0
        %1277 = vmatpush1.msra.mxu0 %v1250
        %1278 = vmatprep.subr.mxu0 0.0
        %1279 = vmatpush1.msra.mxu0 %v1251
        %1280 = vmatprep.subr.mxu0 0.0
        %1281 = vmatpush1.msra.mxu0 %v1252
        %1282 = vmatprep.subr.mxu0 0.0
        %1283 = vmatpush1.msra.mxu0 0.0
        %1284 = vmatprep.subr.mxu0 0.0
        %1285 = vmatpush1.msra.mxu0 0.0
        %1286 = vmatprep.subr.mxu0 0.0
        %1287 = vmatpush1.msra.mxu0 0.0
        %1288 = vmatprep.subr.mxu0 0.0
        %1289 = vmatpush1.msra.mxu0 0.0
        %1290 = vmatprep.subr.mxu0 0.0
        %1291 = vmatpush1.msra.mxu0 0.0
        %1292 = vmatprep.subr.mxu0 0.0
        %1293 = vmatpush1.msra.mxu0 0.0
        %1294 = vmatprep.subr.mxu0 0.0
        %1295 = vmatpush1.msra.mxu0 0.0
        %1296 = vmatprep.subr.mxu0 0.0
        %1297 = vmatpush1.msra.mxu0 0.0
        %1298 = vmatprep.subr.mxu0 0.0
        %1299 = vmatpush1.msra.mxu0 0.0
        %1300 = vmatprep.subr.mxu0 0.0
        %1301 = vmatpush1.msra.mxu0 0.0
        %1302 = vmatprep.subr.mxu0 0.0
        %1303 = vmatpush1.msra.mxu0 0.0
        %1304 = vmatprep.subr.mxu0 0.0
        %1305 = vmatpush1.msra.mxu0 0.0
        %1306 = vmatprep.subr.mxu0 0.0
        %1307 = vmatpush1.msra.mxu0 0.0
        %1308 = vmatprep.subr.mxu0 0.0
        %1309 = vmatpush1.msra.mxu0 0.0
        %1310 = vmatprep.subr.mxu0 0.0
        %1311 = vmatpush1.msra.mxu0 0.0
        %1312 = vmatprep.subr.mxu0 0.0
        %1313 = vmatpush1.msra.mxu0 0.0
        %1314 = vmatprep.subr.mxu0 0.0
        %1315 = vmatpush1.msra.mxu0 0.0
        %1316 = vmatprep.subr.mxu0 0.0
        %1317 = vmatpush1.msra.mxu0 0.0
        %1318 = vmatprep.subr.mxu0 0.0
        %1319 = vmatpush1.msra.mxu0 0.0
        %1320 = vmatprep.subr.mxu0 0.0
        %1321 = vmatpush1.msra.mxu0 0.0
        %1322 = vmatprep.subr.mxu0 0.0
        %1323 = vmatpush1.msra.mxu0 0.0
        %1324 = vmatprep.subr.mxu0 0.0
        %1325 = vmatpush1.msra.mxu0 0.0
        %1326 = vmatprep.subr.mxu0 0.0
        %1327 = vmatpush1.msra.mxu0 0.0
        %1328 = vmatprep.subr.mxu0 0.0
        %1329 = vmatpush1.msra.mxu0 0.0
        %1330 = vmatprep.mubr.f32.mxu0 0.0
        %1331 = vmatmul.mubr.f32.gmra.mrb[0].mxu0 %v1261
        %v1332 = vpop.f32.mrb[0].mxu0
        %v1333 = vadd.f32 %v1258, %v1332
        %v1334 = vpop.f32.mrb[0].mxu0
        %1335 = vmatprep.mubr.f32.mxu0 0.0
        %1336 = vmatmul.mubr.f32.gmra.mrb[0].mxu0 %v1264
        %v1337 = vpop.f32.mrb[0].mxu0
        %v1338 = vadd.f32 %v1258, %v1337
        %v1339 = vpop.f32.mrb[0].mxu0
        %1340 = vdwg.mxu0
        %v1341 = vadd.f32 %v641, %v1333
        %v1342 = vadd.f32 %v642, %v1338
        %v1343 = vld [vmem:[%s611] sm:$0x1]
        %v1344 = vld [vmem:[%s614] sm:$0x1]
        %v1345 = vsel %vm645, %v1341, 0.0
        %1346 = vadd.xlane.f32.xlu0 %v1345
        %v1347 = vpop.xlane.xlu0 %1346
        %v1348 = vsel %vm645, %v1342, 0.0
        %1349 = vadd.xlane.f32.xlu0 %v1348
        %v1350 = vpop.xlane.xlu0 %1349
        %v1351 = vmul.f32 %v1347, %v652
        %v1352 = vmul.f32 %v1350, %v652
        %v1353 = vsub.f32 %v1341, %v1351
        %v1354 = vsub.f32 %v1342, %v1352
        %v1355 = vmul.f32 %v1353, %v1353
        %v1356 = vmul.f32 %v1354, %v1354
        %v1357 = vsel %vm645, %v1355, 0.0
        %1358 = vadd.xlane.f32.xlu0 %v1357
        %v1359 = vpop.xlane.xlu0 %1358
        %v1360 = vsel %vm645, %v1356, 0.0
        %1361 = vadd.xlane.f32.xlu0 %v1360
        %v1362 = vpop.xlane.xlu0 %1361
        %v1363 = vmul.f32 %v1359, %v652
        %v1364 = vmul.f32 %v1362, %v652
        %v1365 = vadd.f32 %v1363, 1e-06
        %v1366 = vadd.f32 %v1364, 1e-06
        %v1367 = vrsqrt.pop %v1365
        %v1368 = vrsqrt.pop %v1366
        %v1369 = vmul.f32 %v1353, %v1367
        %v1370 = vmul.f32 %v1354, %v1368
        %v1372 = vlaneseq
        %v1373 = vshrl.u32 %v1372, 7
        %v1374 = vsub.s32 0, %v1373
        %v1375 = vrot.slane %v1343, %v1374
        %v1377 = vmul.f32 %v1369, %v1375
        %v1378 = vmul.f32 %v1370, %v1375
        %v1380 = vlaneseq
        %v1381 = vshrl.u32 %v1380, 7
        %v1382 = vsub.s32 0, %v1381
        %v1383 = vrot.slane %v1344, %v1382
        %v1385 = vadd.f32 %v1377, %v1383
        %v1386 = vadd.f32 %v1378, %v1383
        %v1387 = vld [vmem:[%s619] sm:$0xff]
        %v1388 = vld [vmem:[%s619 + $0x8] sm:$0xff]
        %v1389 = vld [vmem:[%s619 + $0x10] sm:$0xff]
        %v1390 = vld [vmem:[%s619 + $0x18] sm:$0xff]
        %v1391 = vld [vmem:[%s619 + $0x20] sm:$0xff]
        %v1392 = vld [vmem:[%s619 + $0x28] sm:$0xff]
        %v1393 = vld [vmem:[%s619 + $0x30] sm:$0xff]
        %v1394 = vld [vmem:[%s619 + $0x38] sm:$0xff]
        %v1395 = vld [vmem:[%s619 + $0x40] sm:$0xff]
        %v1396 = vld [vmem:[%s619 + $0x48] sm:$0xff]
        %v1397 = vld [vmem:[%s619 + $0x50] sm:$0xff]
        %v1398 = vld [vmem:[%s619 + $0x58] sm:$0xff]
        %v1399 = vld [vmem:[%s619 + $0x60] sm:$0xff]
        %v1400 = vld [vmem:[%s619 + $0x68] sm:$0xff]
        %v1401 = vld [vmem:[%s619 + $0x70] sm:$0xff]
        %v1402 = vld [vmem:[%s619 + $0x78] sm:$0xff]
        %v1403 = vld [vmem:[%s623] sm:$0x3]
        %v1405 = vlaneseq
        %v1406 = vshrl.u32 %v1405, 7
        %v1407 = vsub.s32 0, %v1406
        %v1408 = vrot.slane %v1403, %v1407
        %v1409 = vlaneseq
        %v1410 = vshrl.u32 %v1409, 7
        %v1411 = vsub.s32 1, %v1410
        %v1412 = vrot.slane %v1403, %v1411
        %v1416 = vsel %vm645, %v1385, 0
        %v1419 = vsel %vm645, %v1386, 0
        %1421 = vmatprep.subr.mxu0 %v1388
        %1422 = vmatpush1.msra.mxu0 %v1387
        %1423 = vmatprep.subr.mxu0 %v1390
        %1424 = vmatpush1.msra.mxu0 %v1389
        %1425 = vmatprep.subr.mxu0 %v1392
        %1426 = vmatpush1.msra.mxu0 %v1391
        %1427 = vmatprep.subr.mxu0 %v1394
        %1428 = vmatpush1.msra.mxu0 %v1393
        %1429 = vmatprep.subr.mxu0 %v1396
        %1430 = vmatpush1.msra.mxu0 %v1395
        %1431 = vmatprep.subr.mxu0 %v1398
        %1432 = vmatpush1.msra.mxu0 %v1397
        %1433 = vmatprep.subr.mxu0 %v1400
        %1434 = vmatpush1.msra.mxu0 %v1399
        %1435 = vmatprep.subr.mxu0 %v1402
        %1436 = vmatpush1.msra.mxu0 %v1401
        %1437 = vmatprep.subr.mxu0 0.0
        %1438 = vmatpush1.msra.mxu0 0.0
        %1439 = vmatprep.subr.mxu0 0.0
        %1440 = vmatpush1.msra.mxu0 0.0
        %1441 = vmatprep.subr.mxu0 0.0
        %1442 = vmatpush1.msra.mxu0 0.0
        %1443 = vmatprep.subr.mxu0 0.0
        %1444 = vmatpush1.msra.mxu0 0.0
        %1445 = vmatprep.subr.mxu0 0.0
        %1446 = vmatpush1.msra.mxu0 0.0
        %1447 = vmatprep.subr.mxu0 0.0
        %1448 = vmatpush1.msra.mxu0 0.0
        %1449 = vmatprep.subr.mxu0 0.0
        %1450 = vmatpush1.msra.mxu0 0.0
        %1451 = vmatprep.subr.mxu0 0.0
        %1452 = vmatpush1.msra.mxu0 0.0
        %1453 = vmatprep.subr.mxu0 0.0
        %1454 = vmatpush1.msra.mxu0 0.0
        %1455 = vmatprep.subr.mxu0 0.0
        %1456 = vmatpush1.msra.mxu0 0.0
        %1457 = vmatprep.subr.mxu0 0.0
        %1458 = vmatpush1.msra.mxu0 0.0
        %1459 = vmatprep.subr.mxu0 0.0
        %1460 = vmatpush1.msra.mxu0 0.0
        %1461 = vmatprep.subr.mxu0 0.0
        %1462 = vmatpush1.msra.mxu0 0.0
        %1463 = vmatprep.subr.mxu0 0.0
        %1464 = vmatpush1.msra.mxu0 0.0
        %1465 = vmatprep.subr.mxu0 0.0
        %1466 = vmatpush1.msra.mxu0 0.0
        %1467 = vmatprep.subr.mxu0 0.0
        %1468 = vmatpush1.msra.mxu0 0.0
        %1469 = vmatprep.subr.mxu0 0.0
        %1470 = vmatpush1.msra.mxu0 0.0
        %1471 = vmatprep.subr.mxu0 0.0
        %1472 = vmatpush1.msra.mxu0 0.0
        %1473 = vmatprep.subr.mxu0 0.0
        %1474 = vmatpush1.msra.mxu0 0.0
        %1475 = vmatprep.subr.mxu0 0.0
        %1476 = vmatpush1.msra.mxu0 0.0
        %1477 = vmatprep.subr.mxu0 0.0
        %1478 = vmatpush1.msra.mxu0 0.0
        %1479 = vmatprep.subr.mxu0 0.0
        %1480 = vmatpush1.msra.mxu0 0.0
        %1481 = vmatprep.subr.mxu0 0.0
        %1482 = vmatpush1.msra.mxu0 0.0
        %1483 = vmatprep.subr.mxu0 0.0
        %1484 = vmatpush1.msra.mxu0 0.0
        %1485 = vmatprep.mubr.f32.mxu0 0.0
        %1486 = vmatmul.mubr.f32.gmra.mrb[0].mxu0 %v1416
        %v1487 = vpop.f32.mrb[0].mxu0
        %v1488 = vadd.f32 %v1408, %v1487
        %v1489 = vpop.f32.mrb[0].mxu0
        %v1490 = vadd.f32 %v1412, %v1489
        %1491 = vmatprep.mubr.f32.mxu0 0.0
        %1492 = vmatmul.mubr.f32.gmra.mrb[0].mxu0 %v1419
        %v1493 = vpop.f32.mrb[0].mxu0
        %v1494 = vadd.f32 %v1408, %v1493
        %v1495 = vpop.f32.mrb[0].mxu0
        %v1496 = vadd.f32 %v1412, %v1495
        %1497 = vdwg.mxu0
        %v1498 = vmul.f32 %v1488, 0.5
        %v1499 = vmul.f32 %v1490, 0.5
        %v1500 = vmul.f32 %v1494, 0.5
        %v1501 = vmul.f32 %v1496, 0.5
        %v1502 = vmul.f32 %v1488, 0.70710677
        %v1503 = vmul.f32 %v1490, 0.70710677
        %v1504 = vmul.f32 %v1494, 0.70710677
        %v1505 = vmul.f32 %v1496, 0.70710677
        %v1506 = verf.f32.pop %v1502
        %v1507 = verf.f32.pop %v1503
        %v1508 = verf.f32.pop %v1504
        %v1509 = verf.f32.pop %v1505
        %v1510 = vadd.f32 %v1506, 1.0
        %v1511 = vadd.f32 %v1507, 1.0
        %v1512 = vadd.f32 %v1508, 1.0
        %v1513 = vadd.f32 %v1509, 1.0
        %v1514 = vmul.f32 %v1498, %v1510
        %v1515 = vmul.f32 %v1499, %v1511
        %v1516 = vmul.f32 %v1500, %v1512
        %v1517 = vmul.f32 %v1501, %v1513
        %v1518 = vld [vmem:[%s628] sm:$0xff]
        %v1519 = vld [vmem:[%s628 + $0x8] sm:$0xff]
        %v1520 = vld [vmem:[%s628 + $0x10] sm:$0xff]
        %v1521 = vld [vmem:[%s628 + $0x18] sm:$0xff]
        %v1522 = vld [vmem:[%s628 + $0x20] sm:$0xff]
        %v1523 = vld [vmem:[%s628 + $0x28] sm:$0xff]
        %v1524 = vld [vmem:[%s628 + $0x30] sm:$0xff]
        %v1525 = vld [vmem:[%s628 + $0x38] sm:$0xff]
        %v1526 = vld [vmem:[%s628 + $0x40] sm:$0xff]
        %v1527 = vld [vmem:[%s628 + $0x48] sm:$0xff]
        %v1528 = vld [vmem:[%s628 + $0x50] sm:$0xff]
        %v1529 = vld [vmem:[%s628 + $0x58] sm:$0xff]
        %v1530 = vld [vmem:[%s628 + $0x60] sm:$0xff]
        %v1531 = vld [vmem:[%s628 + $0x68] sm:$0xff]
        %v1532 = vld [vmem:[%s628 + $0x70] sm:$0xff]
        %v1533 = vld [vmem:[%s628 + $0x78] sm:$0xff]
        %v1534 = vld [vmem:[%s628 + $0x80] sm:$0xff]
        %v1535 = vld [vmem:[%s628 + $0x88] sm:$0xff]
        %v1536 = vld [vmem:[%s628 + $0x90] sm:$0xff]
        %v1537 = vld [vmem:[%s628 + $0x98] sm:$0xff]
        %v1538 = vld [vmem:[%s628 + $0xa0] sm:$0xff]
        %v1539 = vld [vmem:[%s628 + $0xa8] sm:$0xff]
        %v1540 = vld [vmem:[%s628 + $0xb0] sm:$0xff]
        %v1541 = vld [vmem:[%s628 + $0xb8] sm:$0xff]
        %v1542 = vld [vmem:[%s628 + $0xc0] sm:$0xff]
        %v1543 = vld [vmem:[%s628 + $0xc8] sm:$0xff]
        %v1544 = vld [vmem:[%s628 + $0xd0] sm:$0xff]
        %v1545 = vld [vmem:[%s628 + $0xd8] sm:$0xff]
        %v1546 = vld [vmem:[%s628 + $0xe0] sm:$0xff]
        %v1547 = vld [vmem:[%s628 + $0xe8] sm:$0xff]
        %v1548 = vld [vmem:[%s628 + $0xf0] sm:$0xff]
        %v1549 = vld [vmem:[%s628 + $0xf8] sm:$0xff]
        %v1550 = vld [vmem:[%s631] sm:$0x1]
        %v1552 = vlaneseq
        %v1553 = vshrl.u32 %v1552, 7
        %v1554 = vsub.s32 0, %v1553
        %v1555 = vrot.slane %v1550, %v1554
        %1557 = vmatprep.subr.mxu0 0.0
        %1558 = vmatpush1.msra.mxu0 %v1518
        %1559 = vmatprep.subr.mxu0 0.0
        %1560 = vmatpush1.msra.mxu0 %v1519
        %1561 = vmatprep.subr.mxu0 0.0
        %1562 = vmatpush1.msra.mxu0 %v1520
        %1563 = vmatprep.subr.mxu0 0.0
        %1564 = vmatpush1.msra.mxu0 %v1521
        %1565 = vmatprep.subr.mxu0 0.0
        %1566 = vmatpush1.msra.mxu0 %v1522
        %1567 = vmatprep.subr.mxu0 0.0
        %1568 = vmatpush1.msra.mxu0 %v1523
        %1569 = vmatprep.subr.mxu0 0.0
        %1570 = vmatpush1.msra.mxu0 %v1524
        %1571 = vmatprep.subr.mxu0 0.0
        %1572 = vmatpush1.msra.mxu0 %v1525
        %1573 = vmatprep.subr.mxu0 0.0
        %1574 = vmatpush1.msra.mxu0 %v1526
        %1575 = vmatprep.subr.mxu0 0.0
        %1576 = vmatpush1.msra.mxu0 %v1527
        %1577 = vmatprep.subr.mxu0 0.0
        %1578 = vmatpush1.msra.mxu0 %v1528
        %1579 = vmatprep.subr.mxu0 0.0
        %1580 = vmatpush1.msra.mxu0 %v1529
        %1581 = vmatprep.subr.mxu0 0.0
        %1582 = vmatpush1.msra.mxu0 %v1530
        %1583 = vmatprep.subr.mxu0 0.0
        %1584 = vmatpush1.msra.mxu0 %v1531
        %1585 = vmatprep.subr.mxu0 0.0
        %1586 = vmatpush1.msra.mxu0 %v1532
        %1587 = vmatprep.subr.mxu0 0.0
        %1588 = vmatpush1.msra.mxu0 %v1533
        %1589 = vmatprep.subr.mxu0 0.0
        %1590 = vmatpush1.msra.mxu0 %v1534
        %1591 = vmatprep.subr.mxu0 0.0
        %1592 = vmatpush1.msra.mxu0 %v1535
        %1593 = vmatprep.subr.mxu0 0.0
        %1594 = vmatpush1.msra.mxu0 %v1536
        %1595 = vmatprep.subr.mxu0 0.0
        %1596 = vmatpush1.msra.mxu0 %v1537
        %1597 = vmatprep.subr.mxu0 0.0
        %1598 = vmatpush1.msra.mxu0 %v1538
        %1599 = vmatprep.subr.mxu0 0.0
        %1600 = vmatpush1.msra.mxu0 %v1539
        %1601 = vmatprep.subr.mxu0 0.0
        %1602 = vmatpush1.msra.mxu0 %v1540
        %1603 = vmatprep.subr.mxu0 0.0
        %1604 = vmatpush1.msra.mxu0 %v1541
        %1605 = vmatprep.subr.mxu0 0.0
        %1606 = vmatpush1.msra.mxu0 %v1542
        %1607 = vmatprep.subr.mxu0 0.0
        %1608 = vmatpush1.msra.mxu0 %v1543
        %1609 = vmatprep.subr.mxu0 0.0
        %1610 = vmatpush1.msra.mxu0 %v1544
        %1611 = vmatprep.subr.mxu0 0.0
        %1612 = vmatpush1.msra.mxu0 %v1545
        %1613 = vmatprep.subr.mxu0 0.0
        %1614 = vmatpush1.msra.mxu0 %v1546
        %1615 = vmatprep.subr.mxu0 0.0
        %1616 = vmatpush1.msra.mxu0 %v1547
        %1617 = vmatprep.subr.mxu0 0.0
        %1618 = vmatpush1.msra.mxu0 %v1548
        %1619 = vmatprep.subr.mxu0 0.0
        %1620 = vmatpush1.msra.mxu0 %v1549
        %1621 = vmatprep.mubr.f32.mxu0 %v1515
        %1622 = vmatmul.mubr.f32.gmra.mrb[0].mxu0 %v1514
        %v1623 = vpop.f32.mrb[0].mxu0
        %v1624 = vadd.f32 %v1555, %v1623
        %v1625 = vpop.f32.mrb[0].mxu0
        %1626 = vmatprep.mubr.f32.mxu0 %v1517
        %1627 = vmatmul.mubr.f32.gmra.mrb[0].mxu0 %v1516
        %v1628 = vpop.f32.mrb[0].mxu0
        %v1629 = vadd.f32 %v1555, %v1628
        %v1630 = vpop.f32.mrb[0].mxu0
        %1631 = vdwg.mxu0
        %v1632 = vadd.f32 %v1341, %v1624
        %v1633 = vadd.f32 %v1342, %v1629
        %1634 = vst.msk [vmem:[#allocation2] sm:$0xff] %vm645, %v1632
        %1635 = vst.msk [vmem:[#allocation2 + $0x8] sm:$0xff] %vm645, %v1633
        // Predicated region
        $region81: #{vgcn_blocks.1} parent=75 // pred_check
          %p1636 = pneg %p393
        $region82: #{vgcn_blocks.1} parent=75 // pred_check_branch
          %1638 = sbr.rel (%p1636) target = $region84
        $region83: #{vgcn_blocks.1} parent=75 // pred_region
          %s1640 = ssub.s32 256, 256
          %1641 = vsyncadd [#allocation3], %s1640
          %s1642 = sshll.u32 [#allocation2], 4
          %s1643 = int_to_ptr.vmem [resolvable:$true] %s1642
          %1648 = dma.vmem_to_hbm [thread:$0]  %s1643, 256, %s14, [#allocation3], 128, 128, 8
        $region84: #{vgcn_blocks.1} parent=75 // pred_fallthru
          _
        // Predicated region
        $region85: #{vgcn_blocks.1} parent=75 // pred_check
          %p1649 = pneg %p393
        $region86: #{vgcn_blocks.1} parent=75 // pred_check_branch
          %1651 = sbr.rel (%p1649) target = $region88
        $region87: #{vgcn_blocks.1} parent=75 // pred_region
          %1652 = dma.done [#allocation3], 256
        $region88: #{vgcn_blocks.1} parent=75 // pred_fallthru
          _
      $region76: #{vgcn_blocks.1} parent=5 // pred_fallthru
        _
      %p1653 = scmp.le.s32.totalorder 2, %s21
      // Predicated region
      $region89: #{vgcn_blocks.1} parent=5 // pred_check
        %p1654 = pneg %p1653
      $region90: #{vgcn_blocks.1} parent=5 // pred_check_branch
        %1656 = sbr.rel (%p1654) target = $region92
      $region91: #{vgcn_blocks.1} parent=5 // pred_region
        %s1657 = ssub.s32 %s21, 2
      $region92: #{vgcn_blocks.1} parent=5 // pred_fallthru
        _
    $region6: #{vgcn_blocks.1} parent=1 // loop_footer
      %s25 = sadd.s32 1, %s21
    $region7: #{vgcn_blocks.1} parent=1 // loop_footer_branch
      %20 = sbr.rel target = $region3
    $region8: #{vgcn_blocks.1} parent=1 // loop_exit
      _
    %1658 = vsyncpa [#allocation3], 1
    %s1659 = scalar_lea.sflag [#allocation3], 1
    %1660 = vsyncpa %s1659, 1

</llo_original>
